<compile_context>
chip_gen: v5e
topology: v5e:2x2
jax: 0.10.0
libtpu: 0.0.40
codegen_flags: <defaults>
</compile_context>

<pallas_src>
import math

import jax
import jax.numpy as jnp
from jax.experimental import pallas as pl
from jax.experimental.pallas import tpu as pltpu


# ----------------------------------------------------------------------------
# Configuration (mirrors NerfMLP.__init__ arguments, small sizes for the demo)
# ----------------------------------------------------------------------------
INPUT_DIM = 48            # input_dim (+ feature_dim, here feature_dim = 0)
CONDITION_DIM = 24        # condition_dim > 0  -> bottleneck + rgb MLP path
NET_DEPTH = 8             # base MLP depth
NET_WIDTH = 128           # base MLP width
SKIP_LAYER = 4            # skip connection period
NET_DEPTH_CONDITION = 1   # rgb MLP depth
NET_WIDTH_CONDITION = 64  # rgb MLP width

N_RGB_EXTRA = NET_DEPTH_CONDITION - 1  # rgb hidden layers beyond the first

# TODO(synk): feature_dim > 0 is just a wrapper-side concat with x before the
# base MLP, and condition_dim == 0 uses a plain rgb DenseLayer; neither path is
# exercised here (feature_dim = 0, condition_dim > 0).
# TODO(synk): fp8 weight storage on v7x is a potential ~2x MXU-rate experiment
# but is not a drop-in for bf16 (accuracy-gated); not implemented here.

# The fused-head path assumes the base MLP does not end with a skip concat
# (true for net_depth=8, skip_layer=4: hidden_features == net_width).
assert not (SKIP_LAYER is not None and NET_DEPTH > 1
            and (NET_DEPTH - 1) % SKIP_LAYER == 0 and (NET_DEPTH - 1) > 0)


def _round_up(a, b):
    return ((a + b - 1) // b) * b


def _device_kind():
    try:
        return jax.devices()[0].device_kind.lower()
    except Exception:
        return ""


def _default_merge_k():
    # Merge the K-split matmuls only on 256-deep MXU generations (v6e / v7x).
    kind = _device_kind()
    return ("v6" in kind) or ("v7" in kind) or ("trillium" in kind)


def _default_tile_rows():
    kind = _device_kind()
    if "v7" in kind:
        return 2048       # 64 MiB VMEM/TC; 2 TCs want >= 2 grid steps anyway
    if ("v5" in kind) or ("v6" in kind):
        return 4096
    return 2048


# ----------------------------------------------------------------------------
# Parameter construction (xavier_uniform weights / zero biases, matching the
# torch init distribution; stored as (in, out) == torch W.T), f32 reference
# layout: flat list [w0, b0, w1, b1, ...]
# ----------------------------------------------------------------------------
def _xavier_uniform(key, fan_in, fan_out):
    bound = math.sqrt(6.0 / (fan_in + fan_out))
    return jax.random.uniform(
        key, (fan_in, fan_out), minval=-bound, maxval=bound, dtype=jnp.float32
    )


def make_flat_params(key):
    layer_dims = []

    # --- base MLP (output_enabled=False) ---
    in_features = INPUT_DIM
    for i in range(NET_DEPTH):
        layer_dims.append((in_features, NET_WIDTH))
        if SKIP_LAYER is not None and i % SKIP_LAYER == 0 and i > 0:
            in_features = NET_WIDTH + INPUT_DIM
        else:
            in_features = NET_WIDTH
    hidden_features = NET_WIDTH  # base.output_dim

    # --- sigma head / bottleneck head ---
    layer_dims.append((hidden_features, 1))
    layer_dims.append((hidden_features, NET_WIDTH))
    # --- rgb MLP: hidden layers then output layer (skip_layer=None) ---
    in_features = NET_WIDTH + CONDITION_DIM
    for _ in range(NET_DEPTH_CONDITION):
        layer_dims.append((in_features, NET_WIDTH_CONDITION))
        in_features = NET_WIDTH_CONDITION
    layer_dims.append((in_features, 3))

    keys = jax.random.split(key, len(layer_dims))
    flat = []
    for k, (fi, fo) in zip(keys, layer_dims):
        flat.append(_xavier_uniform(k, fi, fo))
        flat.append(jnp.zeros((1, fo), dtype=jnp.float32))  # bias_init = zeros
    return flat


# ----------------------------------------------------------------------------
# Pack the flat f32 params into the kernel's operand list:
#   weights -> bf16 (MXU-native), biases -> f32
#   - 128x128 hidden weights stacked into one 3D operand
#   - skip-layer weight: split (h-part + x-part) or merged (W+IN, W)
#   - sigma + bottleneck fused column-wise into (W, W+1)
#   - rgb first-layer weight: split (W,Wc)+(COND,Wc) or merged (W+COND, Wc)
# ----------------------------------------------------------------------------
def pack_params(flat, *, merge_k):
    n_layers = len(flat) // 2
    ws = [flat[2 * i] for i in range(n_layers)]
    bs = [flat[2 * i + 1] for i in range(n_layers)]
    bf16 = jnp.bfloat16

    # base MLP hidden layers
    w_hid_parts, w_skip_parts = [], []
    for i in range(1, NET_DEPTH):
        w = ws[i]
        if SKIP_LAYER is not None and (i - 1) % SKIP_LAYER == 0 and (i - 1) > 0:
            w_hid_parts.append(w[:NET_WIDTH, :])                 # h-part
            w_skip_parts.append(w if merge_k else w[NET_WIDTH:, :])
        else:
            w_hid_parts.append(w)
    if not w_skip_parts:  # keep the operand shape static even if unused
        dim = NET_WIDTH + INPUT_DIM if merge_k else INPUT_DIM
        w_skip_parts.append(jnp.zeros((dim, NET_WIDTH), jnp.float32))

    w0 = ws[0].astype(bf16)                                      # (in, W)
    w_hid = jnp.stack(w_hid_parts).astype(bf16)                  # (depth-1, W, W)
    w_skip = jnp.stack(w_skip_parts).astype(bf16)                # (n_skip, *, W)
    b_hid = jnp.concatenate(
        [b.reshape(1, -1) for b in bs[:NET_DEPTH]], axis=0)      # (depth, W) f32

    # fused [bottleneck | sigma] head
    w_sigma, b_sigma = ws[NET_DEPTH], bs[NET_DEPTH]
    w_bott, b_bott = ws[NET_DEPTH + 1], bs[NET_DEPTH + 1]
    w_head = jnp.concatenate([w_bott, w_sigma], axis=1).astype(bf16)  # (W, W+1)
    b_head = jnp.concatenate([b_bott, b_sigma], axis=1)               # (1, W+1)

    # rgb MLP
    rgb_ws, rgb_bs = ws[NET_DEPTH + 2:], bs[NET_DEPTH + 2:]

    operands = [w0, w_hid, w_skip, b_hid, w_head, b_head]
    if merge_k:
        operands += [rgb_ws[0].astype(bf16)]                     # (W+COND, Wc)
    else:
        operands += [rgb_ws[0][:NET_WIDTH, :].astype(bf16),      # (W, Wc)
                     rgb_ws[0][NET_WIDTH:, :].astype(bf16)]      # (COND, Wc)
    operands += [rgb_bs[0]]                                      # (1, Wc) f32
    if N_RGB_EXTRA > 0:
        operands += [jnp.stack(rgb_ws[1:-1]).astype(bf16),       # (extra, Wc, Wc)
                     jnp.concatenate([b.reshape(1, -1) for b in rgb_bs[1:-1]],
                                     axis=0)]                    # (extra, Wc)
    operands += [rgb_ws[-1].astype(bf16), rgb_bs[-1]]            # (Wc, 3), (1, 3)
    return operands


# ----------------------------------------------------------------------------
# Pallas kernel: full NerfMLP forward for one tile of rays
# ----------------------------------------------------------------------------
def _make_kernel(merge_k, n_rgb_extra):
    def kernel(*refs):
        it = iter(refs)
        x_ref = next(it)
        cond_ref = next(it)
        w0_ref = next(it)
        w_hid_ref = next(it)
        w_skip_ref = next(it)
        b_hid_ref = next(it)
        w_head_ref = next(it)
        b_head_ref = next(it)
        w_rgb0_ref = next(it)
        w_rgb_c_ref = None if merge_k else next(it)
        b_rgb0_ref = next(it)
        if n_rgb_extra > 0:
            w_rgb_hid_ref = next(it)
            b_rgb_hid_ref = next(it)
        else:
            w_rgb_hid_ref = b_rgb_hid_ref = None
        w_out_ref = next(it)
        b_out_ref = next(it)
        out_ref = next(it)
        cat_scr = next(it) if merge_k else None

        bf16 = jnp.bfloat16

        def mm(a_bf16, w_bf16):
            # bf16 x bf16 -> f32 accumulate on the MXU
            return jnp.dot(a_bf16, w_bf16, preferred_element_type=jnp.float32)

        x_bf = x_ref[...]        # (T, INPUT_DIM) bf16 (cast done in wrapper)
        cond_bf = cond_ref[...]  # (T, CONDITION_DIM) bf16

        # ---- base MLP: ReLU hidden layers; skip-concat either merged into a
        # single K=(W+IN) matmul (staged via VMEM scratch) or as a split sum --
        h = jnp.maximum(mm(x_bf, w0_ref[...]) + b_hid_ref[0:1, :], 0.0)  # f32
        skip_idx = 0
        for i in range(1, NET_DEPTH):
            is_skip = (SKIP_LAYER is not None
                       and (i - 1) % SKIP_LAYER == 0 and (i - 1) > 0)
            h_bf = h.astype(bf16)
            if is_skip and merge_k:
                cat_scr[:, :NET_WIDTH] = h_bf
                cat_scr[:, NET_WIDTH:NET_WIDTH + INPUT_DIM] = x_bf
                z = mm(cat_scr[:, :NET_WIDTH + INPUT_DIM], w_skip_ref[skip_idx])
                skip_idx += 1
            else:
                z = mm(h_bf, w_hid_ref[i - 1])
                if is_skip:
                    z = z + mm(x_bf, w_skip_ref[skip_idx])
                    skip_idx += 1
            h = jnp.maximum(z + b_hid_ref[i:i + 1, :], 0.0)

        # ---- fused [bottleneck | sigma] head (linear, identity activation) --
        head = mm(h.astype(bf16), w_head_ref[...]) + b_head_ref[...]  # (T, W+1)
        bottleneck = head[:, :NET_WIDTH]
        raw_sigma = head[:, NET_WIDTH:NET_WIDTH + 1]

        # ---- rgb MLP on [bottleneck, condition] --------------------------
        b_bf = bottleneck.astype(bf16)
        if merge_k:
            cat_scr[:, :NET_WIDTH] = b_bf
            cat_scr[:, NET_WIDTH:NET_WIDTH + CONDITION_DIM] = cond_bf
            hr = mm(cat_scr[:, :NET_WIDTH + CONDITION_DIM], w_rgb0_ref[...])
        else:
            hr = mm(b_bf, w_rgb0_ref[...]) + mm(cond_bf, w_rgb_c_ref[...])
        hr = jnp.maximum(hr + b_rgb0_ref[...], 0.0)

        for j in range(n_rgb_extra):
            hr = jnp.maximum(
                mm(hr.astype(bf16), w_rgb_hid_ref[j]) + b_rgb_hid_ref[j:j + 1, :],
                0.0,
            )
        raw_rgb = mm(hr.astype(bf16), w_out_ref[...]) + b_out_ref[...]  # (T, 3)

        # packed output: cols 0:3 = rgb, col 3 = sigma (two slice stores,
        # no lane-axis concat)
        out_ref[:, 0:3] = raw_rgb.astype(out_ref.dtype)
        out_ref[:, 3:4] = raw_sigma.astype(out_ref.dtype)

    return kernel


def _flops_per_row():
    f = 2 * INPUT_DIM * NET_WIDTH                       # layer 0
    for i in range(1, NET_DEPTH):
        f += 2 * NET_WIDTH * NET_WIDTH
        if SKIP_LAYER is not None and (i - 1) % SKIP_LAYER == 0 and (i - 1) > 0:
            f += 2 * INPUT_DIM * NET_WIDTH
    f += 2 * NET_WIDTH * (NET_WIDTH + 1)                # fused head
    f += 2 * (NET_WIDTH + CONDITION_DIM) * NET_WIDTH_CONDITION
    f += N_RGB_EXTRA * 2 * NET_WIDTH_CONDITION * NET_WIDTH_CONDITION
    f += 2 * NET_WIDTH_CONDITION * 3
    return f


# ----------------------------------------------------------------------------
# Wrapper
# ----------------------------------------------------------------------------
def nerf_mlp_forward(x, condition, packed_params, *, merge_k, tile_rows=None):
    """x: [..., INPUT_DIM], condition: [num_rays, CONDITION_DIM] or matching
    prefix of x.  Returns (raw_rgb [..., 3], raw_sigma [..., 1])."""
    prefix = x.shape[:-1]
    # PyTorch broadcast semantics: expand condition to x's prefix shape.
    if condition.shape[:-1] != prefix:
        num_rays, n_dim = condition.shape
        cshape = (num_rays,) + (1,) * (x.ndim - condition.ndim) + (n_dim,)
        condition = jnp.broadcast_to(
            condition.astype(jnp.bfloat16).reshape(cshape), prefix + (n_dim,))

    # single wrapper pass: flatten + cast to bf16 (MXU operand dtype); no pad.
    xf = x.reshape(-1, x.shape[-1]).astype(jnp.bfloat16)
    cf = condition.reshape(-1, condition.shape[-1]).astype(jnp.bfloat16)
    n = xf.shape[0]

    if tile_rows is None:
        tile_rows = _default_tile_rows()
    # Cap so the grid has >= 2 steps when possible (v7x megacore); keep the row
    # tile a multiple of 128 so blocks stay sublane/lane aligned.
    tile_rows = min(int(tile_rows), _round_up(pl.cdiv(n, 2), 128))
    tile_rows = max(128, _round_up(tile_rows, 128))

    grid = (pl.cdiv(n, tile_rows),)   # ragged last block handled by Pallas

    def row_spec(d):
        return pl.BlockSpec((tile_rows, d), lambda i: (i, 0))

    def full_spec(a):
        nd = a.ndim
        return pl.BlockSpec(a.shape, lambda i, _nd=nd: (0,) * _nd)

    in_specs = [row_spec(xf.shape[1]), row_spec(cf.shape[1])]
    in_specs += [full_spec(a) for a in packed_params]

    scratch_shapes = []
    cat_w = max(NET_WIDTH + INPUT_DIM, NET_WIDTH + CONDITION_DIM)
    if merge_k:
        scratch_shapes.append(pltpu.VMEM((tile_rows, cat_w), jnp.bfloat16))

    # vmem limit sized from the tile (default scoped limit is only 16 MiB on
    # v5e); capped well under every generation's physical VMEM.
    weight_bytes = sum(int(a.size) * a.dtype.itemsize for a in packed_params)
    io_bytes = 2 * (tile_rows * (xf.shape[1] + cf.shape[1]) * 2   # bf16 in, x2 buf
                    + tile_rows * 4 * 4)                          # f32 out, x2 buf
    scratch_bytes = (tile_rows * cat_w * 2) if merge_k else 0
    work_bytes = 16 * tile_rows * NET_WIDTH * 4                   # f32 temporaries
    vmem_limit = int(min(2 * weight_bytes + io_bytes + scratch_bytes
                         + work_bytes + (2 << 20), 48 << 20))

    cost = pl.CostEstimate(
        flops=int(n) * _flops_per_row(),
        transcendentals=0,
        bytes_accessed=int(n) * ((xf.shape[1] + cf.shape[1]) * 2 + 4 * 4)
        + weight_bytes,
    )

    out = pl.pallas_call(
        _make_kernel(merge_k, N_RGB_EXTRA),
        grid=grid,
        in_specs=in_specs,
        out_specs=row_spec(4),
        out_shape=jax.ShapeDtypeStruct((n, 4), jnp.float32),
        scratch_shapes=scratch_shapes,
        compiler_params=pltpu.CompilerParams(
            dimension_semantics=("parallel",),
            vmem_limit_bytes=vmem_limit,
        ),
        cost_estimate=cost,
    )(xf, cf, *packed_params)

    rgb = out[:, 0:3].reshape(prefix + (3,))
    sigma = out[:, 3:4].reshape(prefix + (1,))
    return rgb, sigma


# ----------------------------------------------------------------------------
# Pure-JAX reference (same structure as the torch module; emulates the
# kernel's bf16 matmul operands so the check tolerance stays tight)
# ----------------------------------------------------------------------------
def nerf_mlp_reference(x, condition, flat_params, *, emulate_bf16=True):
    p = flat_params

    def cast(a):
        return a.astype(jnp.bfloat16) if emulate_bf16 else a

    def dense(idx, h):
        return jnp.dot(cast(h), cast(p[2 * idx]),
                       preferred_element_type=jnp.float32) + p[2 * idx + 1]

    idx = 0
    inputs = x
    h = inputs
    for i in range(NET_DEPTH):
        h = jnp.maximum(dense(idx, h), 0.0)
        idx += 1
        if SKIP_LAYER is not None and i % SKIP_LAYER == 0 and i > 0:
            h = jnp.concatenate([h, inputs], axis=-1)
    raw_sigma = dense(idx, h)
    idx += 1
    bottleneck = dense(idx, h)
    idx += 1
    hr = jnp.concatenate([bottleneck, condition], axis=-1)
    for _ in range(NET_DEPTH_CONDITION):
        hr = jnp.maximum(dense(idx, hr), 0.0)
        idx += 1
    raw_rgb = dense(idx, hr)
    return raw_rgb, raw_sigma


# ----------------------------------------------------------------------------
# Demo
# ----------------------------------------------------------------------------
if __name__ == "__main__":
    key = jax.random.PRNGKey(0)
    kp, kx, kc = jax.random.split(key, 3)

    flat_params = make_flat_params(kp)   # f32, torch-equivalent layout

    # 2 rays x 100 samples = 200 points: exercises the >=2-step grid cap and
    # the ragged (non-divisible) last block; condition per-ray exercises the
    # broadcast branch of forward().
    N_RAYS, N_SAMPLES = 2, 100
    x = jax.random.normal(kx, (N_RAYS, N_SAMPLES, INPUT_DIM), dtype=jnp.float32)
    condition = jax.random.normal(kc, (N_RAYS, CONDITION_DIM), dtype=jnp.float32)

    def _run(mk):
        packed = pack_params(flat_params, merge_k=mk)
        r, s = nerf_mlp_forward(x, condition, packed, merge_k=mk)
        return jax.block_until_ready(r), jax.block_until_ready(s)

    merge_k = _default_merge_k()
    try:
        rgb, sigma = _run(merge_k)
    except Exception:
        # fall back to the K-split formulation (works on every generation)
        if not merge_k:
            raise
        merge_k = False
        rgb, sigma = _run(False)

    # reference check (bf16-emulated reference; loose tol covers reassociation
    # from the split/merged/fused matmuls)
    cond_b = jnp.broadcast_to(
        condition[:, None, :], (N_RAYS, N_SAMPLES, CONDITION_DIM))
    rgb_ref, sigma_ref = nerf_mlp_reference(
        x.reshape(-1, INPUT_DIM), cond_b.reshape(-1, CONDITION_DIM), flat_params)
    assert rgb.shape == (N_RAYS, N_SAMPLES, 3)
    assert sigma.shape == (N_RAYS, N_SAMPLES, 1)
    assert jnp.allclose(rgb.reshape(-1, 3), rgb_ref, atol=1e-2, rtol=1e-2)
    assert jnp.allclose(sigma.reshape(-1, 1), sigma_ref, atol=1e-2, rtol=1e-2)

    print("KERNEL_OK")
</pallas_src>

<mosaic_0001>
module attributes {stable_mosaic.version = 11 : i64} {
  func.func @kernel(%arg0: i32, %arg1: memref<128x48xbf16, #tpu.memory_space<vmem>>, %arg2: memref<128x24xbf16, #tpu.memory_space<vmem>>, %arg3: memref<48x128xbf16, #tpu.memory_space<vmem>>, %arg4: memref<7x128x128xbf16, #tpu.memory_space<vmem>>, %arg5: memref<1x48x128xbf16, #tpu.memory_space<vmem>>, %arg6: memref<8x128xf32, #tpu.memory_space<vmem>>, %arg7: memref<128x129xbf16, #tpu.memory_space<vmem>>, %arg8: memref<1x129xf32, #tpu.memory_space<vmem>>, %arg9: memref<128x64xbf16, #tpu.memory_space<vmem>>, %arg10: memref<24x64xbf16, #tpu.memory_space<vmem>>, %arg11: memref<1x64xf32, #tpu.memory_space<vmem>>, %arg12: memref<64x3xbf16, #tpu.memory_space<vmem>>, %arg13: memref<1x3xf32, #tpu.memory_space<vmem>>, %arg14: memref<128x4xf32, #tpu.memory_space<vmem>>) attributes {dimension_semantics = [#tpu.dimension_semantics<parallel>], iteration_bounds = array<i64: 2>, scalar_prefetch = 0 : i64, scratch_operands = 0 : i64, tpu.core_type = #tpu.core_type<tc>, window_params = [{transform_indices = @transform_0, window_bounds = array<i64: 128, 48>}, {transform_indices = @transform_1, window_bounds = array<i64: 128, 24>}, {pipeline_mode = #tpu.pipeline_mode<synchronous>, transform_indices = @transform_2, window_bounds = array<i64: 48, 128>}, {pipeline_mode = #tpu.pipeline_mode<synchronous>, transform_indices = @transform_3, window_bounds = array<i64: 7, 128, 128>}, {pipeline_mode = #tpu.pipeline_mode<synchronous>, transform_indices = @transform_4, window_bounds = array<i64: 1, 48, 128>}, {pipeline_mode = #tpu.pipeline_mode<synchronous>, transform_indices = @transform_5, window_bounds = array<i64: 8, 128>}, {pipeline_mode = #tpu.pipeline_mode<synchronous>, transform_indices = @transform_6, window_bounds = array<i64: 128, 129>}, {pipeline_mode = #tpu.pipeline_mode<synchronous>, transform_indices = @transform_7, window_bounds = array<i64: 1, 129>}, {pipeline_mode = #tpu.pipeline_mode<synchronous>, transform_indices = @transform_8, window_bounds = array<i64: 128, 64>}, {pipeline_mode = #tpu.pipeline_mode<synchronous>, transform_indices = @transform_9, window_bounds = array<i64: 24, 64>}, {pipeline_mode = #tpu.pipeline_mode<synchronous>, transform_indices = @transform_10, window_bounds = array<i64: 1, 64>}, {pipeline_mode = #tpu.pipeline_mode<synchronous>, transform_indices = @transform_11, window_bounds = array<i64: 64, 3>}, {pipeline_mode = #tpu.pipeline_mode<synchronous>, transform_indices = @transform_12, window_bounds = array<i64: 1, 3>}, {transform_indices = @transform_13, window_bounds = array<i64: 128, 4>}]} {
    %c0 = arith.constant 0 : index
    %c0_0 = arith.constant 0 : index
    %0 = vector.load %arg1[%c0, %c0_0] : memref<128x48xbf16, #tpu.memory_space<vmem>>, vector<128x48xbf16>
    %c0_1 = arith.constant 0 : index
    %c0_2 = arith.constant 0 : index
    %1 = vector.load %arg2[%c0_1, %c0_2] : memref<128x24xbf16, #tpu.memory_space<vmem>>, vector<128x24xbf16>
    %c0_3 = arith.constant 0 : index
    %c0_4 = arith.constant 0 : index
    %2 = vector.load %arg3[%c0_3, %c0_4] : memref<48x128xbf16, #tpu.memory_space<vmem>>, vector<48x128xbf16>
    %cst = arith.constant dense<0.000000e+00> : vector<128x128xf32>
    %3 = tpu.matmul %0, %2, %cst {dimension_numbers = #tpu.dot_dimension_numbers<[1], [0], [0], [1], [0, 0, 1, 1], [], []>} : vector<128x48xbf16>, vector<48x128xbf16>, vector<128x128xf32> -> vector<128x128xf32>
    %c0_5 = arith.constant 0 : index
    %c0_6 = arith.constant 0 : index
    %4 = vector.load %arg6[%c0_5, %c0_6] : memref<8x128xf32, #tpu.memory_space<vmem>>, vector<1x128xf32>
    %5 = vector.broadcast %4 : vector<1x128xf32> to vector<128x128xf32>
    %6 = arith.addf %3, %5 : vector<128x128xf32>
    %cst_7 = arith.constant 0.000000e+00 : f32
    %7 = vector.broadcast %cst_7 : f32 to vector<128x128xf32>
    %8 = arith.maximumf %6, %7 : vector<128x128xf32>
    %9 = arith.truncf %8 : vector<128x128xf32> to vector<128x128xbf16>
    %c0_8 = arith.constant 0 : index
    %c0_9 = arith.constant 0 : index
    %c0_10 = arith.constant 0 : index
    %10 = vector.load %arg4[%c0_8, %c0_9, %c0_10] : memref<7x128x128xbf16, #tpu.memory_space<vmem>>, vector<1x128x128xbf16>
    %11 = vector.shape_cast %10 : vector<1x128x128xbf16> to vector<128x128xbf16>
    %cst_11 = arith.constant dense<0.000000e+00> : vector<128x128xf32>
    %12 = tpu.matmul %9, %11, %cst_11 {dimension_numbers = #tpu.dot_dimension_numbers<[1], [0], [0], [1], [0, 0, 1, 1], [], []>} : vector<128x128xbf16>, vector<128x128xbf16>, vector<128x128xf32> -> vector<128x128xf32>
    %c1 = arith.constant 1 : index
    %c0_12 = arith.constant 0 : index
    %13 = vector.load %arg6[%c1, %c0_12] : memref<8x128xf32, #tpu.memory_space<vmem>>, vector<1x128xf32>
    %14 = vector.broadcast %13 : vector<1x128xf32> to vector<128x128xf32>
    %15 = arith.addf %12, %14 : vector<128x128xf32>
    %cst_13 = arith.constant 0.000000e+00 : f32
    %16 = vector.broadcast %cst_13 : f32 to vector<128x128xf32>
    %17 = arith.maximumf %15, %16 : vector<128x128xf32>
    %18 = arith.truncf %17 : vector<128x128xf32> to vector<128x128xbf16>
    %c1_14 = arith.constant 1 : index
    %c0_15 = arith.constant 0 : index
    %c0_16 = arith.constant 0 : index
    %19 = vector.load %arg4[%c1_14, %c0_15, %c0_16] : memref<7x128x128xbf16, #tpu.memory_space<vmem>>, vector<1x128x128xbf16>
    %20 = vector.shape_cast %19 : vector<1x128x128xbf16> to vector<128x128xbf16>
    %cst_17 = arith.constant dense<0.000000e+00> : vector<128x128xf32>
    %21 = tpu.matmul %18, %20, %cst_17 {dimension_numbers = #tpu.dot_dimension_numbers<[1], [0], [0], [1], [0, 0, 1, 1], [], []>} : vector<128x128xbf16>, vector<128x128xbf16>, vector<128x128xf32> -> vector<128x128xf32>
    %c2 = arith.constant 2 : index
    %c0_18 = arith.constant 0 : index
    %22 = vector.load %arg6[%c2, %c0_18] : memref<8x128xf32, #tpu.memory_space<vmem>>, vector<1x128xf32>
    %23 = vector.broadcast %22 : vector<1x128xf32> to vector<128x128xf32>
    %24 = arith.addf %21, %23 : vector<128x128xf32>
    %cst_19 = arith.constant 0.000000e+00 : f32
    %25 = vector.broadcast %cst_19 : f32 to vector<128x128xf32>
    %26 = arith.maximumf %24, %25 : vector<128x128xf32>
    %27 = arith.truncf %26 : vector<128x128xf32> to vector<128x128xbf16>
    %c2_20 = arith.constant 2 : index
    %c0_21 = arith.constant 0 : index
    %c0_22 = arith.constant 0 : index
    %28 = vector.load %arg4[%c2_20, %c0_21, %c0_22] : memref<7x128x128xbf16, #tpu.memory_space<vmem>>, vector<1x128x128xbf16>
    %29 = vector.shape_cast %28 : vector<1x128x128xbf16> to vector<128x128xbf16>
    %cst_23 = arith.constant dense<0.000000e+00> : vector<128x128xf32>
    %30 = tpu.matmul %27, %29, %cst_23 {dimension_numbers = #tpu.dot_dimension_numbers<[1], [0], [0], [1], [0, 0, 1, 1], [], []>} : vector<128x128xbf16>, vector<128x128xbf16>, vector<128x128xf32> -> vector<128x128xf32>
    %c3 = arith.constant 3 : index
    %c0_24 = arith.constant 0 : index
    %31 = vector.load %arg6[%c3, %c0_24] : memref<8x128xf32, #tpu.memory_space<vmem>>, vector<1x128xf32>
    %32 = vector.broadcast %31 : vector<1x128xf32> to vector<128x128xf32>
    %33 = arith.addf %30, %32 : vector<128x128xf32>
    %cst_25 = arith.constant 0.000000e+00 : f32
    %34 = vector.broadcast %cst_25 : f32 to vector<128x128xf32>
    %35 = arith.maximumf %33, %34 : vector<128x128xf32>
    %36 = arith.truncf %35 : vector<128x128xf32> to vector<128x128xbf16>
    %c3_26 = arith.constant 3 : index
    %c0_27 = arith.constant 0 : index
    %c0_28 = arith.constant 0 : index
    %37 = vector.load %arg4[%c3_26, %c0_27, %c0_28] : memref<7x128x128xbf16, #tpu.memory_space<vmem>>, vector<1x128x128xbf16>
    %38 = vector.shape_cast %37 : vector<1x128x128xbf16> to vector<128x128xbf16>
    %cst_29 = arith.constant dense<0.000000e+00> : vector<128x128xf32>
    %39 = tpu.matmul %36, %38, %cst_29 {dimension_numbers = #tpu.dot_dimension_numbers<[1], [0], [0], [1], [0, 0, 1, 1], [], []>} : vector<128x128xbf16>, vector<128x128xbf16>, vector<128x128xf32> -> vector<128x128xf32>
    %c4 = arith.constant 4 : index
    %c0_30 = arith.constant 0 : index
    %40 = vector.load %arg6[%c4, %c0_30] : memref<8x128xf32, #tpu.memory_space<vmem>>, vector<1x128xf32>
    %41 = vector.broadcast %40 : vector<1x128xf32> to vector<128x128xf32>
    %42 = arith.addf %39, %41 : vector<128x128xf32>
    %cst_31 = arith.constant 0.000000e+00 : f32
    %43 = vector.broadcast %cst_31 : f32 to vector<128x128xf32>
    %44 = arith.maximumf %42, %43 : vector<128x128xf32>
    %45 = arith.truncf %44 : vector<128x128xf32> to vector<128x128xbf16>
    %c4_32 = arith.constant 4 : index
    %c0_33 = arith.constant 0 : index
    %c0_34 = arith.constant 0 : index
    %46 = vector.load %arg4[%c4_32, %c0_33, %c0_34] : memref<7x128x128xbf16, #tpu.memory_space<vmem>>, vector<1x128x128xbf16>
    %47 = vector.shape_cast %46 : vector<1x128x128xbf16> to vector<128x128xbf16>
    %cst_35 = arith.constant dense<0.000000e+00> : vector<128x128xf32>
    %48 = tpu.matmul %45, %47, %cst_35 {dimension_numbers = #tpu.dot_dimension_numbers<[1], [0], [0], [1], [0, 0, 1, 1], [], []>} : vector<128x128xbf16>, vector<128x128xbf16>, vector<128x128xf32> -> vector<128x128xf32>
    %c0_36 = arith.constant 0 : index
    %c0_37 = arith.constant 0 : index
    %c0_38 = arith.constant 0 : index
    %49 = vector.load %arg5[%c0_36, %c0_37, %c0_38] : memref<1x48x128xbf16, #tpu.memory_space<vmem>>, vector<1x48x128xbf16>
    %50 = vector.shape_cast %49 : vector<1x48x128xbf16> to vector<48x128xbf16>
    %cst_39 = arith.constant dense<0.000000e+00> : vector<128x128xf32>
    %51 = tpu.matmul %0, %50, %cst_39 {dimension_numbers = #tpu.dot_dimension_numbers<[1], [0], [0], [1], [0, 0, 1, 1], [], []>} : vector<128x48xbf16>, vector<48x128xbf16>, vector<128x128xf32> -> vector<128x128xf32>
    %52 = arith.addf %48, %51 : vector<128x128xf32>
    %c5 = arith.constant 5 : index
    %c0_40 = arith.constant 0 : index
    %53 = vector.load %arg6[%c5, %c0_40] : memref<8x128xf32, #tpu.memory_space<vmem>>, vector<1x128xf32>
    %54 = vector.broadcast %53 : vector<1x128xf32> to vector<128x128xf32>
    %55 = arith.addf %52, %54 : vector<128x128xf32>
    %cst_41 = arith.constant 0.000000e+00 : f32
    %56 = vector.broadcast %cst_41 : f32 to vector<128x128xf32>
    %57 = arith.maximumf %55, %56 : vector<128x128xf32>
    %58 = arith.truncf %57 : vector<128x128xf32> to vector<128x128xbf16>
    %c5_42 = arith.constant 5 : index
    %c0_43 = arith.constant 0 : index
    %c0_44 = arith.constant 0 : index
    %59 = vector.load %arg4[%c5_42, %c0_43, %c0_44] : memref<7x128x128xbf16, #tpu.memory_space<vmem>>, vector<1x128x128xbf16>
    %60 = vector.shape_cast %59 : vector<1x128x128xbf16> to vector<128x128xbf16>
    %cst_45 = arith.constant dense<0.000000e+00> : vector<128x128xf32>
    %61 = tpu.matmul %58, %60, %cst_45 {dimension_numbers = #tpu.dot_dimension_numbers<[1], [0], [0], [1], [0, 0, 1, 1], [], []>} : vector<128x128xbf16>, vector<128x128xbf16>, vector<128x128xf32> -> vector<128x128xf32>
    %c6 = arith.constant 6 : index
    %c0_46 = arith.constant 0 : index
    %62 = vector.load %arg6[%c6, %c0_46] : memref<8x128xf32, #tpu.memory_space<vmem>>, vector<1x128xf32>
    %63 = vector.broadcast %62 : vector<1x128xf32> to vector<128x128xf32>
    %64 = arith.addf %61, %63 : vector<128x128xf32>
    %cst_47 = arith.constant 0.000000e+00 : f32
    %65 = vector.broadcast %cst_47 : f32 to vector<128x128xf32>
    %66 = arith.maximumf %64, %65 : vector<128x128xf32>
    %67 = arith.truncf %66 : vector<128x128xf32> to vector<128x128xbf16>
    %c6_48 = arith.constant 6 : index
    %c0_49 = arith.constant 0 : index
    %c0_50 = arith.constant 0 : index
    %68 = vector.load %arg4[%c6_48, %c0_49, %c0_50] : memref<7x128x128xbf16, #tpu.memory_space<vmem>>, vector<1x128x128xbf16>
    %69 = vector.shape_cast %68 : vector<1x128x128xbf16> to vector<128x128xbf16>
    %cst_51 = arith.constant dense<0.000000e+00> : vector<128x128xf32>
    %70 = tpu.matmul %67, %69, %cst_51 {dimension_numbers = #tpu.dot_dimension_numbers<[1], [0], [0], [1], [0, 0, 1, 1], [], []>} : vector<128x128xbf16>, vector<128x128xbf16>, vector<128x128xf32> -> vector<128x128xf32>
    %c7 = arith.constant 7 : index
    %c0_52 = arith.constant 0 : index
    %71 = vector.load %arg6[%c7, %c0_52] : memref<8x128xf32, #tpu.memory_space<vmem>>, vector<1x128xf32>
    %72 = vector.broadcast %71 : vector<1x128xf32> to vector<128x128xf32>
    %73 = arith.addf %70, %72 : vector<128x128xf32>
    %cst_53 = arith.constant 0.000000e+00 : f32
    %74 = vector.broadcast %cst_53 : f32 to vector<128x128xf32>
    %75 = arith.maximumf %73, %74 : vector<128x128xf32>
    %76 = arith.truncf %75 : vector<128x128xf32> to vector<128x128xbf16>
    %c0_54 = arith.constant 0 : index
    %c0_55 = arith.constant 0 : index
    %77 = vector.load %arg7[%c0_54, %c0_55] : memref<128x129xbf16, #tpu.memory_space<vmem>>, vector<128x129xbf16>
    %cst_56 = arith.constant dense<0.000000e+00> : vector<128x129xf32>
    %78 = tpu.matmul %76, %77, %cst_56 {dimension_numbers = #tpu.dot_dimension_numbers<[1], [0], [0], [1], [0, 0, 1, 1], [], []>} : vector<128x128xbf16>, vector<128x129xbf16>, vector<128x129xf32> -> vector<128x129xf32>
    %c0_57 = arith.constant 0 : index
    %c0_58 = arith.constant 0 : index
    %79 = vector.load %arg8[%c0_57, %c0_58] : memref<1x129xf32, #tpu.memory_space<vmem>>, vector<1x129xf32>
    %80 = vector.broadcast %79 : vector<1x129xf32> to vector<128x129xf32>
    %81 = arith.addf %78, %80 : vector<128x129xf32>
    %82 = vector.extract_strided_slice %81 {offsets = [0, 0], sizes = [128, 128], strides = [1, 1]} : vector<128x129xf32> to vector<128x128xf32>
    %83 = vector.extract_strided_slice %81 {offsets = [0, 128], sizes = [128, 1], strides = [1, 1]} : vector<128x129xf32> to vector<128x1xf32>
    %84 = arith.truncf %82 : vector<128x128xf32> to vector<128x128xbf16>
    %c0_59 = arith.constant 0 : index
    %c0_60 = arith.constant 0 : index
    %85 = vector.load %arg9[%c0_59, %c0_60] : memref<128x64xbf16, #tpu.memory_space<vmem>>, vector<128x64xbf16>
    %cst_61 = arith.constant dense<0.000000e+00> : vector<128x64xf32>
    %86 = tpu.matmul %84, %85, %cst_61 {dimension_numbers = #tpu.dot_dimension_numbers<[1], [0], [0], [1], [0, 0, 1, 1], [], []>} : vector<128x128xbf16>, vector<128x64xbf16>, vector<128x64xf32> -> vector<128x64xf32>
    %c0_62 = arith.constant 0 : index
    %c0_63 = arith.constant 0 : index
    %87 = vector.load %arg10[%c0_62, %c0_63] : memref<24x64xbf16, #tpu.memory_space<vmem>>, vector<24x64xbf16>
    %cst_64 = arith.constant dense<0.000000e+00> : vector<128x64xf32>
    %88 = tpu.matmul %1, %87, %cst_64 {dimension_numbers = #tpu.dot_dimension_numbers<[1], [0], [0], [1], [0, 0, 1, 1], [], []>} : vector<128x24xbf16>, vector<24x64xbf16>, vector<128x64xf32> -> vector<128x64xf32>
    %89 = arith.addf %86, %88 : vector<128x64xf32>
    %c0_65 = arith.constant 0 : index
    %c0_66 = arith.constant 0 : index
    %90 = vector.load %arg11[%c0_65, %c0_66] : memref<1x64xf32, #tpu.memory_space<vmem>>, vector<1x64xf32>
    %91 = vector.broadcast %90 : vector<1x64xf32> to vector<128x64xf32>
    %92 = arith.addf %89, %91 : vector<128x64xf32>
    %cst_67 = arith.constant 0.000000e+00 : f32
    %93 = vector.broadcast %cst_67 : f32 to vector<128x64xf32>
    %94 = arith.maximumf %92, %93 : vector<128x64xf32>
    %95 = arith.truncf %94 : vector<128x64xf32> to vector<128x64xbf16>
    %c0_68 = arith.constant 0 : index
    %c0_69 = arith.constant 0 : index
    %96 = vector.load %arg12[%c0_68, %c0_69] : memref<64x3xbf16, #tpu.memory_space<vmem>>, vector<64x3xbf16>
    %cst_70 = arith.constant dense<0.000000e+00> : vector<128x3xf32>
    %97 = tpu.matmul %95, %96, %cst_70 {dimension_numbers = #tpu.dot_dimension_numbers<[1], [0], [0], [1], [0, 0, 1, 1], [], []>} : vector<128x64xbf16>, vector<64x3xbf16>, vector<128x3xf32> -> vector<128x3xf32>
    %c0_71 = arith.constant 0 : index
    %c0_72 = arith.constant 0 : index
    %98 = vector.load %arg13[%c0_71, %c0_72] : memref<1x3xf32, #tpu.memory_space<vmem>>, vector<1x3xf32>
    %99 = vector.broadcast %98 : vector<1x3xf32> to vector<128x3xf32>
    %100 = arith.addf %97, %99 : vector<128x3xf32>
    %c0_73 = arith.constant 0 : index
    %c0_74 = arith.constant 0 : index
    %101 = vector.load %arg14[%c0_73, %c0_74] : memref<128x4xf32, #tpu.memory_space<vmem>>, vector<128x3xf32>
    tpu.vector_store %arg14[%c0_73, %c0_74], %100 {strides = array<i32>} : memref<128x4xf32, #tpu.memory_space<vmem>>, vector<128x3xf32>,
    %c0_75 = arith.constant 0 : index
    %c3_76 = arith.constant 3 : index
    %102 = vector.load %arg14[%c0_75, %c3_76] : memref<128x4xf32, #tpu.memory_space<vmem>>, vector<128x1xf32>
    tpu.vector_store %arg14[%c0_75, %c3_76], %83 {strides = array<i32>} : memref<128x4xf32, #tpu.memory_space<vmem>>, vector<128x1xf32>,
    return
  }
  func.func @transform_0(%arg0: i32) -> (i32, i32) {
    %c0_i32 = arith.constant 0 : i32
    %c0_i32_0 = arith.constant 0 : i32
    return %arg0, %c0_i32 : i32, i32
  }
  func.func @transform_1(%arg0: i32) -> (i32, i32) {
    %c0_i32 = arith.constant 0 : i32
    %c0_i32_0 = arith.constant 0 : i32
    return %arg0, %c0_i32 : i32, i32
  }
  func.func @transform_2(%arg0: i32) -> (i32, i32) {
    %c0_i32 = arith.constant 0 : i32
    %c0_i32_0 = arith.constant 0 : i32
    %c0_i32_1 = arith.constant 0 : i32
    return %c0_i32, %c0_i32_0 : i32, i32
  }
  func.func @transform_3(%arg0: i32) -> (i32, i32, i32) {
    %c0_i32 = arith.constant 0 : i32
    %c0_i32_0 = arith.constant 0 : i32
    %c0_i32_1 = arith.constant 0 : i32
    %c0_i32_2 = arith.constant 0 : i32
    return %c0_i32, %c0_i32_0, %c0_i32_1 : i32, i32, i32
  }
  func.func @transform_4(%arg0: i32) -> (i32, i32, i32) {
    %c0_i32 = arith.constant 0 : i32
    %c0_i32_0 = arith.constant 0 : i32
    %c0_i32_1 = arith.constant 0 : i32
    %c0_i32_2 = arith.constant 0 : i32
    return %c0_i32, %c0_i32_0, %c0_i32_1 : i32, i32, i32
  }
  func.func @transform_5(%arg0: i32) -> (i32, i32) {
    %c0_i32 = arith.constant 0 : i32
    %c0_i32_0 = arith.constant 0 : i32
    %c0_i32_1 = arith.constant 0 : i32
    return %c0_i32, %c0_i32_0 : i32, i32
  }
  func.func @transform_6(%arg0: i32) -> (i32, i32) {
    %c0_i32 = arith.constant 0 : i32
    %c0_i32_0 = arith.constant 0 : i32
    %c0_i32_1 = arith.constant 0 : i32
    return %c0_i32, %c0_i32_0 : i32, i32
  }
  func.func @transform_7(%arg0: i32) -> (i32, i32) {
    %c0_i32 = arith.constant 0 : i32
    %c0_i32_0 = arith.constant 0 : i32
    %c0_i32_1 = arith.constant 0 : i32
    return %c0_i32, %c0_i32_0 : i32, i32
  }
  func.func @transform_8(%arg0: i32) -> (i32, i32) {
    %c0_i32 = arith.constant 0 : i32
    %c0_i32_0 = arith.constant 0 : i32
    %c0_i32_1 = arith.constant 0 : i32
    return %c0_i32, %c0_i32_0 : i32, i32
  }
  func.func @transform_9(%arg0: i32) -> (i32, i32) {
    %c0_i32 = arith.constant 0 : i32
    %c0_i32_0 = arith.constant 0 : i32
    %c0_i32_1 = arith.constant 0 : i32
    return %c0_i32, %c0_i32_0 : i32, i32
  }
  func.func @transform_10(%arg0: i32) -> (i32, i32) {
    %c0_i32 = arith.constant 0 : i32
    %c0_i32_0 = arith.constant 0 : i32
    %c0_i32_1 = arith.constant 0 : i32
    return %c0_i32, %c0_i32_0 : i32, i32
  }
  func.func @transform_11(%arg0: i32) -> (i32, i32) {
    %c0_i32 = arith.constant 0 : i32
    %c0_i32_0 = arith.constant 0 : i32
    %c0_i32_1 = arith.constant 0 : i32
    return %c0_i32, %c0_i32_0 : i32, i32
  }
  func.func @transform_12(%arg0: i32) -> (i32, i32) {
    %c0_i32 = arith.constant 0 : i32
    %c0_i32_0 = arith.constant 0 : i32
    %c0_i32_1 = arith.constant 0 : i32
    return %c0_i32, %c0_i32_0 : i32, i32
  }
  func.func @transform_13(%arg0: i32) -> (i32, i32) {
    %c0_i32 = arith.constant 0 : i32
    %c0_i32_0 = arith.constant 0 : i32
    return %arg0, %c0_i32 : i32, i32
  }
}

</mosaic_0001>

<llo_original>
// kernel: tpu_custom_call.1
$region0: #{tpu_custom_call.1}
  #allocation0 [shape = 'u32[]', space=smem, size = 0x4, offset = 0x4, fixed_abs, tag = 'smem constant byte address 0x4 - core index']
  #allocation1 [shape = 'u32[72,128]{1,0:T(1,128)}', space=vmem, size = 0x9000, scoped, tag = 'internal scratch']
  %s0 = inlined_call_operand.vmem [shape: bf16[200,48], index: 0, kind: input, shape index: {}]
  %s1 = inlined_call_operand.vmem [shape: bf16[200,24], index: 1, kind: input, shape index: {}]
  %s2 = inlined_call_operand.vmem [shape: bf16[48,128], index: 2, kind: input, shape index: {}]
  %s3 = inlined_call_operand.vmem [shape: bf16[7,128,128], index: 3, kind: input, shape index: {}]
  %s4 = inlined_call_operand.vmem [shape: bf16[1,48,128], index: 4, kind: input, shape index: {}]
  %s5 = inlined_call_operand.vmem [shape: f32[8,128], index: 5, kind: input, shape index: {}]
  %s6 = inlined_call_operand.vmem [shape: bf16[128,129], index: 6, kind: input, shape index: {}]
  %s7 = inlined_call_operand.hbm [shape: f32[1,129], index: 7, kind: input, shape index: {}]
  %s8 = inlined_call_operand.vmem [shape: bf16[128,64], index: 8, kind: input, shape index: {}]
  %s9 = inlined_call_operand.hbm [shape: bf16[24,64], index: 9, kind: input, shape index: {}]
  %s10 = inlined_call_operand.hbm [shape: f32[1,64], index: 10, kind: input, shape index: {}]
  %s11 = inlined_call_operand.vmem [shape: bf16[64,3], index: 11, kind: input, shape index: {}]
  %s12 = inlined_call_operand.hbm [shape: f32[1,3], index: 12, kind: input, shape index: {}]
  %s13 = inlined_call_operand.vmem [shape: f32[200,4], index: 13, kind: output, shape index: {}]
  %s14 = sld [smem:[#allocation0]]
  $region149: #{tpu_custom_call.1} parent=0
    _
  %s16 = ssub.s32 1, %s14
  %s17 = scalar_select 0, %s16, %s14
  $region1: #{tpu_custom_call.1} parent=0
    #allocation2 [shape = 'u8[1024]{0}', space=vmem, size = 0x400, scoped, tag = 'input window, operand 7, single buffered']
    #allocation3 [shape = 's32[2]{0}', space=sflag, size = 0x8, scoped, tag = 'scoped memory for tpu_custom_call.1']
    #allocation4 [shape = 'u8[6144]{0}', space=vmem, size = 0x1800, scoped, tag = 'input window, operand 9, single buffered']
    #allocation5 [shape = 's32[1]{0}', space=sflag, size = 0x4, scoped, tag = 'scoped memory for tpu_custom_call.1']
    #allocation6 [shape = 'u8[512]{0}', space=vmem, size = 0x400, scoped, tag = 'input window, operand 10, single buffered']
    #allocation7 [shape = 'u8[512]{0}', space=vmem, size = 0x400, scoped, tag = 'input window, operand 12, single buffered']
    #allocation8 [shape = 's32[1]{0}', space=sflag, size = 0x4, scoped, tag = 'scoped memory for tpu_custom_call.1']
    #allocation9 [shape = 'u8[131072]{0}', space=vmem, size = 0x20000, scoped, tag = 'output window, operand 0']
    %18 = vsyncpa [#allocation3], 0
    %19 = vsyncpa [#allocation5], 0
    %20 = vsyncpa [#allocation8], 0
    loop: start=0, step=1, limit=4
    $region2: #{tpu_custom_call.1} parent=1 // loop_pre_header
      _
    $region3: #{tpu_custom_call.1} parent=1 // loop_header
      %s22 = sphi 0, %s26
      %p23 = scmp.ge.s32.totalorder %s22, 4
      %s32 = sphi 0, %s34
      %s35 = sphi 0, %s32
      %s36 = sphi 0, %s35
      %s52 = sphi 0, %s36
      %s58 = sphi 0, %s60
      %s61 = sphi 0, %s58
      %s62 = sphi 0, %s61
      %s78 = sphi 0, %s62
      %s82 = sphi 0, %s82
      %s84 = sphi 0, %s82
      %s85 = sphi 0, %s84
      %s99 = sphi 0, %s85
      %s103 = sphi 0, %s103
      %s105 = sphi 0, %s103
      %s106 = sphi 0, %s105
      %s120 = sphi 0, %s106
      %s124 = sphi 0, %s124
      %s126 = sphi 0, %s124
      %s127 = sphi 0, %s126
      %s141 = sphi 0, %s127
      %s145 = sphi 0, %s145
      %s147 = sphi 0, %s145
      %s148 = sphi 0, %s147
      %s162 = sphi 0, %s148
      %s166 = sphi 0, %s166
      %s168 = sphi 0, %s166
      %s169 = sphi 0, %s168
      %s183 = sphi 0, %s169
      %s187 = sphi 0, %s187
      %s189 = sphi 0, %s187
      %s190 = sphi 0, %s189
      %s204 = sphi 0, %s190
      %s208 = sphi 0, %s208
      %s210 = sphi 0, %s208
      %s211 = sphi 0, %s210
      %s225 = sphi 0, %s211
      %s229 = sphi 0, %s229
      %s231 = sphi 0, %s229
      %s232 = sphi 0, %s231
      %s246 = sphi 0, %s232
      %s250 = sphi 0, %s250
      %s252 = sphi 0, %s250
      %s253 = sphi 0, %s252
      %s267 = sphi 0, %s253
      %s271 = sphi 0, %s271
      %s273 = sphi 0, %s271
      %s274 = sphi 0, %s273
      %s288 = sphi 0, %s274
      %s292 = sphi 0, %s292
      %s294 = sphi 0, %s292
      %s295 = sphi 0, %s294
      %s309 = sphi 0, %s295
      %s315 = sphi 0, %s317
      %s318 = sphi 0, %s315
      %s319 = sphi 0, %s318
      %s335 = sphi 0, %s319
    $region4: #{tpu_custom_call.1} parent=1 // loop_header_branch
      %25 = sbr.rel (%p23) target = $region8
    $region5: #{tpu_custom_call.1} parent=1 // loop_body
      %s27 = ssub.s32 %s22, 1
      %s28 = ssub.s32 %s22, 2
      %s29 = sadd.s32 %s22, 1
      %s30 = ssub.s32 %s22, %s29
      %p31 = scmp.eq.s32.totalorder %s30, 0
      %s33 = sadd.s32 %s32, 1
      %s34 = scalar_select %p31, %s32, %s33
      %p37 = pneg %p31
      %p38 = scmp.eq.s32.totalorder %s22, 1
      %p39 = por %p37, %p38
      %p40 = scmp.ne.s32.totalorder %s32, %s35
      %p41 = scmp.eq.s32.totalorder %s22, 0
      %p42 = por %p40, %p41
      %p43 = scmp.ne.s32.totalorder %s32, %s35
      %p44 = scmp.eq.s32.totalorder %s27, 1
      %p45 = por %p43, %p44
      %p46 = scmp.ne.s32.totalorder %s35, %s36
      %p47 = scmp.eq.s32.totalorder %s27, 0
      %p48 = por %p46, %p47
      %p49 = scmp.ne.s32.totalorder %s35, %s36
      %p50 = scmp.eq.s32.totalorder %s28, 1
      %p51 = por %p49, %p50
      %p53 = scmp.ne.s32.totalorder %s36, %s52
      %p54 = scmp.eq.s32.totalorder %s28, 0
      %p55 = por %p53, %p54
      %s56 = ssub.s32 %s22, %s29
      %p57 = scmp.eq.s32.totalorder %s56, 0
      %s59 = sadd.s32 %s58, 1
      %s60 = scalar_select %p57, %s58, %s59
      %p63 = pneg %p57
      %p64 = scmp.eq.s32.totalorder %s22, 1
      %p65 = por %p63, %p64
      %p66 = scmp.ne.s32.totalorder %s58, %s61
      %p67 = scmp.eq.s32.totalorder %s22, 0
      %p68 = por %p66, %p67
      %p69 = scmp.ne.s32.totalorder %s58, %s61
      %p70 = scmp.eq.s32.totalorder %s27, 1
      %p71 = por %p69, %p70
      %p72 = scmp.ne.s32.totalorder %s61, %s62
      %p73 = scmp.eq.s32.totalorder %s27, 0
      %p74 = por %p72, %p73
      %p75 = scmp.ne.s32.totalorder %s61, %s62
      %p76 = scmp.eq.s32.totalorder %s28, 1
      %p77 = por %p75, %p76
      %p79 = scmp.ne.s32.totalorder %s62, %s78
      %p80 = scmp.eq.s32.totalorder %s28, 0
      %p81 = por %p79, %p80
      %s83 = sadd.s32 %s82, 1
      %p86 = scmp.eq.s32.totalorder %s22, 1
      %p87 = scmp.ne.s32.totalorder %s82, %s84
      %p88 = scmp.eq.s32.totalorder %s22, 0
      %p89 = por %p87, %p88
      %p90 = scmp.ne.s32.totalorder %s82, %s84
      %p91 = scmp.eq.s32.totalorder %s27, 1
      %p92 = por %p90, %p91
      %p93 = scmp.ne.s32.totalorder %s84, %s85
      %p94 = scmp.eq.s32.totalorder %s27, 0
      %p95 = por %p93, %p94
      %p96 = scmp.ne.s32.totalorder %s84, %s85
      %p97 = scmp.eq.s32.totalorder %s28, 1
      %p98 = por %p96, %p97
      %p100 = scmp.ne.s32.totalorder %s85, %s99
      %p101 = scmp.eq.s32.totalorder %s28, 0
      %p102 = por %p100, %p101
      %s104 = sadd.s32 %s103, 1
      %p107 = scmp.eq.s32.totalorder %s22, 1
      %p108 = scmp.ne.s32.totalorder %s103, %s105
      %p109 = scmp.eq.s32.totalorder %s22, 0
      %p110 = por %p108, %p109
      %p111 = scmp.ne.s32.totalorder %s103, %s105
      %p112 = scmp.eq.s32.totalorder %s27, 1
      %p113 = por %p111, %p112
      %p114 = scmp.ne.s32.totalorder %s105, %s106
      %p115 = scmp.eq.s32.totalorder %s27, 0
      %p116 = por %p114, %p115
      %p117 = scmp.ne.s32.totalorder %s105, %s106
      %p118 = scmp.eq.s32.totalorder %s28, 1
      %p119 = por %p117, %p118
      %p121 = scmp.ne.s32.totalorder %s106, %s120
      %p122 = scmp.eq.s32.totalorder %s28, 0
      %p123 = por %p121, %p122
      %s125 = sadd.s32 %s124, 1
      %p128 = scmp.eq.s32.totalorder %s22, 1
      %p129 = scmp.ne.s32.totalorder %s124, %s126
      %p130 = scmp.eq.s32.totalorder %s22, 0
      %p131 = por %p129, %p130
      %p132 = scmp.ne.s32.totalorder %s124, %s126
      %p133 = scmp.eq.s32.totalorder %s27, 1
      %p134 = por %p132, %p133
      %p135 = scmp.ne.s32.totalorder %s126, %s127
      %p136 = scmp.eq.s32.totalorder %s27, 0
      %p137 = por %p135, %p136
      %p138 = scmp.ne.s32.totalorder %s126, %s127
      %p139 = scmp.eq.s32.totalorder %s28, 1
      %p140 = por %p138, %p139
      %p142 = scmp.ne.s32.totalorder %s127, %s141
      %p143 = scmp.eq.s32.totalorder %s28, 0
      %p144 = por %p142, %p143
      %s146 = sadd.s32 %s145, 1
      %p149 = scmp.eq.s32.totalorder %s22, 1
      %p150 = scmp.ne.s32.totalorder %s145, %s147
      %p151 = scmp.eq.s32.totalorder %s22, 0
      %p152 = por %p150, %p151
      %p153 = scmp.ne.s32.totalorder %s145, %s147
      %p154 = scmp.eq.s32.totalorder %s27, 1
      %p155 = por %p153, %p154
      %p156 = scmp.ne.s32.totalorder %s147, %s148
      %p157 = scmp.eq.s32.totalorder %s27, 0
      %p158 = por %p156, %p157
      %p159 = scmp.ne.s32.totalorder %s147, %s148
      %p160 = scmp.eq.s32.totalorder %s28, 1
      %p161 = por %p159, %p160
      %p163 = scmp.ne.s32.totalorder %s148, %s162
      %p164 = scmp.eq.s32.totalorder %s28, 0
      %p165 = por %p163, %p164
      %s167 = sadd.s32 %s166, 1
      %p170 = scmp.eq.s32.totalorder %s22, 1
      %p171 = scmp.ne.s32.totalorder %s166, %s168
      %p172 = scmp.eq.s32.totalorder %s22, 0
      %p173 = por %p171, %p172
      %p174 = scmp.ne.s32.totalorder %s166, %s168
      %p175 = scmp.eq.s32.totalorder %s27, 1
      %p176 = por %p174, %p175
      %p177 = scmp.ne.s32.totalorder %s168, %s169
      %p178 = scmp.eq.s32.totalorder %s27, 0
      %p179 = por %p177, %p178
      %p180 = scmp.ne.s32.totalorder %s168, %s169
      %p181 = scmp.eq.s32.totalorder %s28, 1
      %p182 = por %p180, %p181
      %p184 = scmp.ne.s32.totalorder %s169, %s183
      %p185 = scmp.eq.s32.totalorder %s28, 0
      %p186 = por %p184, %p185
      %s188 = sadd.s32 %s187, 1
      %p191 = scmp.eq.s32.totalorder %s22, 1
      %p192 = scmp.ne.s32.totalorder %s187, %s189
      %p193 = scmp.eq.s32.totalorder %s22, 0
      %p194 = por %p192, %p193
      %p195 = scmp.ne.s32.totalorder %s187, %s189
      %p196 = scmp.eq.s32.totalorder %s27, 1
      %p197 = por %p195, %p196
      %p198 = scmp.ne.s32.totalorder %s189, %s190
      %p199 = scmp.eq.s32.totalorder %s27, 0
      %p200 = por %p198, %p199
      %p201 = scmp.ne.s32.totalorder %s189, %s190
      %p202 = scmp.eq.s32.totalorder %s28, 1
      %p203 = por %p201, %p202
      %p205 = scmp.ne.s32.totalorder %s190, %s204
      %p206 = scmp.eq.s32.totalorder %s28, 0
      %p207 = por %p205, %p206
      %s209 = sadd.s32 %s208, 1
      %p212 = scmp.eq.s32.totalorder %s22, 1
      %p213 = scmp.ne.s32.totalorder %s208, %s210
      %p214 = scmp.eq.s32.totalorder %s22, 0
      %p215 = por %p213, %p214
      %p216 = scmp.ne.s32.totalorder %s208, %s210
      %p217 = scmp.eq.s32.totalorder %s27, 1
      %p218 = por %p216, %p217
      %p219 = scmp.ne.s32.totalorder %s210, %s211
      %p220 = scmp.eq.s32.totalorder %s27, 0
      %p221 = por %p219, %p220
      %p222 = scmp.ne.s32.totalorder %s210, %s211
      %p223 = scmp.eq.s32.totalorder %s28, 1
      %p224 = por %p222, %p223
      %p226 = scmp.ne.s32.totalorder %s211, %s225
      %p227 = scmp.eq.s32.totalorder %s28, 0
      %p228 = por %p226, %p227
      %s230 = sadd.s32 %s229, 1
      %p233 = scmp.eq.s32.totalorder %s22, 1
      %p234 = scmp.ne.s32.totalorder %s229, %s231
      %p235 = scmp.eq.s32.totalorder %s22, 0
      %p236 = por %p234, %p235
      %p237 = scmp.ne.s32.totalorder %s229, %s231
      %p238 = scmp.eq.s32.totalorder %s27, 1
      %p239 = por %p237, %p238
      %p240 = scmp.ne.s32.totalorder %s231, %s232
      %p241 = scmp.eq.s32.totalorder %s27, 0
      %p242 = por %p240, %p241
      %p243 = scmp.ne.s32.totalorder %s231, %s232
      %p244 = scmp.eq.s32.totalorder %s28, 1
      %p245 = por %p243, %p244
      %p247 = scmp.ne.s32.totalorder %s232, %s246
      %p248 = scmp.eq.s32.totalorder %s28, 0
      %p249 = por %p247, %p248
      %s251 = sadd.s32 %s250, 1
      %p254 = scmp.eq.s32.totalorder %s22, 1
      %p255 = scmp.ne.s32.totalorder %s250, %s252
      %p256 = scmp.eq.s32.totalorder %s22, 0
      %p257 = por %p255, %p256
      %p258 = scmp.ne.s32.totalorder %s250, %s252
      %p259 = scmp.eq.s32.totalorder %s27, 1
      %p260 = por %p258, %p259
      %p261 = scmp.ne.s32.totalorder %s252, %s253
      %p262 = scmp.eq.s32.totalorder %s27, 0
      %p263 = por %p261, %p262
      %p264 = scmp.ne.s32.totalorder %s252, %s253
      %p265 = scmp.eq.s32.totalorder %s28, 1
      %p266 = por %p264, %p265
      %p268 = scmp.ne.s32.totalorder %s253, %s267
      %p269 = scmp.eq.s32.totalorder %s28, 0
      %p270 = por %p268, %p269
      %s272 = sadd.s32 %s271, 1
      %p275 = scmp.eq.s32.totalorder %s22, 1
      %p276 = scmp.ne.s32.totalorder %s271, %s273
      %p277 = scmp.eq.s32.totalorder %s22, 0
      %p278 = por %p276, %p277
      %p279 = scmp.ne.s32.totalorder %s271, %s273
      %p280 = scmp.eq.s32.totalorder %s27, 1
      %p281 = por %p279, %p280
      %p282 = scmp.ne.s32.totalorder %s273, %s274
      %p283 = scmp.eq.s32.totalorder %s27, 0
      %p284 = por %p282, %p283
      %p285 = scmp.ne.s32.totalorder %s273, %s274
      %p286 = scmp.eq.s32.totalorder %s28, 1
      %p287 = por %p285, %p286
      %p289 = scmp.ne.s32.totalorder %s274, %s288
      %p290 = scmp.eq.s32.totalorder %s28, 0
      %p291 = por %p289, %p290
      %s293 = sadd.s32 %s292, 1
      %p296 = scmp.eq.s32.totalorder %s22, 1
      %p297 = scmp.ne.s32.totalorder %s292, %s294
      %p298 = scmp.eq.s32.totalorder %s22, 0
      %p299 = por %p297, %p298
      %p300 = scmp.ne.s32.totalorder %s292, %s294
      %p301 = scmp.eq.s32.totalorder %s27, 1
      %p302 = por %p300, %p301
      %p303 = scmp.ne.s32.totalorder %s294, %s295
      %p304 = scmp.eq.s32.totalorder %s27, 0
      %p305 = por %p303, %p304
      %p306 = scmp.ne.s32.totalorder %s294, %s295
      %p307 = scmp.eq.s32.totalorder %s28, 1
      %p308 = por %p306, %p307
      %p310 = scmp.ne.s32.totalorder %s295, %s309
      %p311 = scmp.eq.s32.totalorder %s28, 0
      %p312 = por %p310, %p311
      %s313 = ssub.s32 %s22, %s29
      %p314 = scmp.eq.s32.totalorder %s313, 0
      %s316 = sadd.s32 %s315, 1
      %s317 = scalar_select %p314, %s315, %s316
      %p320 = pneg %p314
      %p321 = scmp.eq.s32.totalorder %s22, 1
      %p322 = por %p320, %p321
      %p323 = scmp.ne.s32.totalorder %s315, %s318
      %p324 = scmp.eq.s32.totalorder %s22, 0
      %p325 = por %p323, %p324
      %p326 = scmp.ne.s32.totalorder %s315, %s318
      %p327 = scmp.eq.s32.totalorder %s27, 1
      %p328 = por %p326, %p327
      %p329 = scmp.ne.s32.totalorder %s318, %s319
      %p330 = scmp.eq.s32.totalorder %s27, 0
      %p331 = por %p329, %p330
      %p332 = scmp.ne.s32.totalorder %s318, %s319
      %p333 = scmp.eq.s32.totalorder %s28, 1
      %p334 = por %p332, %p333
      %p336 = scmp.ne.s32.totalorder %s319, %s335
      %p337 = scmp.eq.s32.totalorder %s28, 0
      %p338 = por %p336, %p337
      %p339 = scmp.le.s32.totalorder 1, %s22
      %p340 = scmp.lt.s32.totalorder %s22, 3
      %p341 = pnand %p339, %p340
      %p342 = pneg %p341
      // Predicated region
      $region9: #{tpu_custom_call.1} parent=5 // pred_check
        _
      $region10: #{tpu_custom_call.1} parent=5 // pred_check_branch
        %344 = sbr.rel (%p341) target = $region12
      $region11: #{tpu_custom_call.1} parent=5 // pred_region
        %s345 = ssub.s32 %s22, 1
        // Predicated region
        $region13: #{tpu_custom_call.1} parent=11 // pred_check
          %p346 = pneg %p95
        $region14: #{tpu_custom_call.1} parent=11 // pred_check_branch
          %348 = sbr.rel (%p346) target = $region16
        $region15: #{tpu_custom_call.1} parent=11 // pred_region
          _
        $region16: #{tpu_custom_call.1} parent=11 // pred_fallthru
          _
        // Predicated region
        $region17: #{tpu_custom_call.1} parent=11 // pred_check
          %p349 = pneg %p116
        $region18: #{tpu_custom_call.1} parent=11 // pred_check_branch
          %351 = sbr.rel (%p349) target = $region20
        $region19: #{tpu_custom_call.1} parent=11 // pred_region
          _
        $region20: #{tpu_custom_call.1} parent=11 // pred_fallthru
          _
        // Predicated region
        $region21: #{tpu_custom_call.1} parent=11 // pred_check
          %p352 = pneg %p137
        $region22: #{tpu_custom_call.1} parent=11 // pred_check_branch
          %354 = sbr.rel (%p352) target = $region24
        $region23: #{tpu_custom_call.1} parent=11 // pred_region
          _
        $region24: #{tpu_custom_call.1} parent=11 // pred_fallthru
          _
        // Predicated region
        $region25: #{tpu_custom_call.1} parent=11 // pred_check
          %p355 = pneg %p158
        $region26: #{tpu_custom_call.1} parent=11 // pred_check_branch
          %357 = sbr.rel (%p355) target = $region28
        $region27: #{tpu_custom_call.1} parent=11 // pred_region
          _
        $region28: #{tpu_custom_call.1} parent=11 // pred_fallthru
          _
        // Predicated region
        $region29: #{tpu_custom_call.1} parent=11 // pred_check
          %p358 = pneg %p179
        $region30: #{tpu_custom_call.1} parent=11 // pred_check_branch
          %360 = sbr.rel (%p358) target = $region32
        $region31: #{tpu_custom_call.1} parent=11 // pred_region
          _
        $region32: #{tpu_custom_call.1} parent=11 // pred_fallthru
          _
        // Predicated region
        $region33: #{tpu_custom_call.1} parent=11 // pred_check
          %p361 = pneg %p200
        $region34: #{tpu_custom_call.1} parent=11 // pred_check_branch
          %363 = sbr.rel (%p361) target = $region36
        $region35: #{tpu_custom_call.1} parent=11 // pred_region
          %365 = vsyncadd [#allocation3], 0
          %s367 = sshll.u32 %s7, 4
          %s368 = int_to_ptr.hbm [resolvable:$true] %s367
          %s369 = sshll.u32 [#allocation2], 4
          %s370 = int_to_ptr.vmem [resolvable:$true] %s369
          %372 = dma.hbm_to_vmem [thread:$0]  %s368, 32, %s370, [#allocation3]
        $region36: #{tpu_custom_call.1} parent=11 // pred_fallthru
          _
        // Predicated region
        $region37: #{tpu_custom_call.1} parent=11 // pred_check
          %p373 = pneg %p221
        $region38: #{tpu_custom_call.1} parent=11 // pred_check_branch
          %375 = sbr.rel (%p373) target = $region40
        $region39: #{tpu_custom_call.1} parent=11 // pred_region
          _
        $region40: #{tpu_custom_call.1} parent=11 // pred_fallthru
          _
        // Predicated region
        $region41: #{tpu_custom_call.1} parent=11 // pred_check
          %p376 = pneg %p242
        $region42: #{tpu_custom_call.1} parent=11 // pred_check_branch
          %378 = sbr.rel (%p376) target = $region44
        $region43: #{tpu_custom_call.1} parent=11 // pred_region
          %380 = vsyncadd [#allocation5], 0
          %s381 = sshll.u32 %s9, 4
          %s382 = int_to_ptr.hbm [resolvable:$true] %s381
          %s383 = sshll.u32 [#allocation4], 4
          %s384 = int_to_ptr.vmem [resolvable:$true] %s383
          %389 = dma.hbm_to_vmem [thread:$0]  %s382, 192, %s384, [#allocation5], 64, 64, 4
        $region44: #{tpu_custom_call.1} parent=11 // pred_fallthru
          _
        // Predicated region
        $region45: #{tpu_custom_call.1} parent=11 // pred_check
          %p390 = pneg %p263
        $region46: #{tpu_custom_call.1} parent=11 // pred_check_branch
          %392 = sbr.rel (%p390) target = $region48
        $region47: #{tpu_custom_call.1} parent=11 // pred_region
          %394 = vsyncadd [#allocation5], 0
          %s396 = sshll.u32 %s10, 4
          %s397 = int_to_ptr.hbm [resolvable:$true] %s396
          %s398 = sshll.u32 [#allocation6], 4
          %s399 = int_to_ptr.vmem [resolvable:$true] %s398
          %401 = dma.hbm_to_vmem [thread:$0]  %s397, 16, %s399, [#allocation5]
        $region48: #{tpu_custom_call.1} parent=11 // pred_fallthru
          _
        // Predicated region
        $region49: #{tpu_custom_call.1} parent=11 // pred_check
          %p402 = pneg %p284
        $region50: #{tpu_custom_call.1} parent=11 // pred_check_branch
          %404 = sbr.rel (%p402) target = $region52
        $region51: #{tpu_custom_call.1} parent=11 // pred_region
          _
        $region52: #{tpu_custom_call.1} parent=11 // pred_fallthru
          _
        // Predicated region
        $region53: #{tpu_custom_call.1} parent=11 // pred_check
          %p405 = pneg %p305
        $region54: #{tpu_custom_call.1} parent=11 // pred_check_branch
          %407 = sbr.rel (%p405) target = $region56
        $region55: #{tpu_custom_call.1} parent=11 // pred_region
          %409 = vsyncadd [#allocation8], 0
          %s411 = sshll.u32 %s12, 4
          %s412 = int_to_ptr.hbm [resolvable:$true] %s411
          %s413 = sshll.u32 [#allocation7], 4
          %s414 = int_to_ptr.vmem [resolvable:$true] %s413
          %416 = dma.hbm_to_vmem [thread:$0]  %s412, 16, %s414, [#allocation8]
        $region56: #{tpu_custom_call.1} parent=11 // pred_fallthru
          _
      $region12: #{tpu_custom_call.1} parent=5 // pred_fallthru
        _
      %p417 = scmp.lt.s32.totalorder %s22, 2
      // Predicated region
      $region57: #{tpu_custom_call.1} parent=5 // pred_check
        %p418 = pneg %p417
      $region58: #{tpu_custom_call.1} parent=5 // pred_check_branch
        %420 = sbr.rel (%p418) target = $region60
      $region59: #{tpu_custom_call.1} parent=5 // pred_region
        // Predicated region
        $region61: #{tpu_custom_call.1} parent=59 // pred_check
          %p421 = pneg %p42
        $region62: #{tpu_custom_call.1} parent=59 // pred_check_branch
          %423 = sbr.rel (%p421) target = $region64
        $region63: #{tpu_custom_call.1} parent=59 // pred_region
          %s424 = smul.u32 16, %s22
          %s425 = ssub.s32 25, %s424
          %p426 = scmp.lt.s32.totalorder %s425, 16
          %s427 = scalar_select %p426, %s425, 16
          %s428 = smul.u32 4, %s427
          %p429 = scmp.lt.s32.totalorder %s424, 24
          %s430 = scalar_select %p429, %s424, 24
          %s431 = smul.addr %s430, 4
          %s432 = scalar_lea.vmem %s0, %s431
          %s433 = smul.u32 16, %s22
          %s434 = ssub.s32 25, %s433
          %p435 = scmp.lt.s32.totalorder %s434, 16
          %s436 = scalar_select %p435, %s434, 16
          %s437 = smul.u32 4, %s436
        $region64: #{tpu_custom_call.1} parent=59 // pred_fallthru
          _
        // Predicated region
        $region65: #{tpu_custom_call.1} parent=59 // pred_check
          %p438 = pneg %p68
        $region66: #{tpu_custom_call.1} parent=59 // pred_check_branch
          %440 = sbr.rel (%p438) target = $region68
        $region67: #{tpu_custom_call.1} parent=59 // pred_region
          %s441 = smul.u32 16, %s22
          %s442 = ssub.s32 25, %s441
          %p443 = scmp.lt.s32.totalorder %s442, 16
          %s444 = scalar_select %p443, %s442, 16
          %s445 = smul.u32 4, %s444
          %p446 = scmp.lt.s32.totalorder %s441, 24
          %s447 = scalar_select %p446, %s441, 24
          %s448 = smul.addr %s447, 4
          %s449 = scalar_lea.vmem %s1, %s448
          %s450 = smul.u32 16, %s22
          %s451 = ssub.s32 25, %s450
          %p452 = scmp.lt.s32.totalorder %s451, 16
          %s453 = scalar_select %p452, %s451, 16
          %s454 = smul.u32 4, %s453
        $region68: #{tpu_custom_call.1} parent=59 // pred_fallthru
          _
      $region60: #{tpu_custom_call.1} parent=5 // pred_fallthru
        _
      %p455 = scmp.le.s32.totalorder 1, %s22
      %p456 = scmp.lt.s32.totalorder %s22, 3
      %p457 = pnand %p455, %p456
      %p458 = pneg %p457
      // Predicated region
      $region69: #{tpu_custom_call.1} parent=5 // pred_check
        _
      $region70: #{tpu_custom_call.1} parent=5 // pred_check_branch
        %460 = sbr.rel (%p457) target = $region72
      $region71: #{tpu_custom_call.1} parent=5 // pred_region
        %s461 = ssub.s32 %s22, 1
        // Predicated region
        $region73: #{tpu_custom_call.1} parent=71 // pred_check
          %p462 = pneg %p200
        $region74: #{tpu_custom_call.1} parent=71 // pred_check_branch
          %464 = sbr.rel (%p462) target = $region76
        $region75: #{tpu_custom_call.1} parent=71 // pred_region
          %466 = dma.done [#allocation3], 32
        $region76: #{tpu_custom_call.1} parent=71 // pred_fallthru
          _
        // Predicated region
        $region77: #{tpu_custom_call.1} parent=71 // pred_check
          %p467 = pneg %p242
        $region78: #{tpu_custom_call.1} parent=71 // pred_check_branch
          %469 = sbr.rel (%p467) target = $region80
        $region79: #{tpu_custom_call.1} parent=71 // pred_region
          %471 = dma.done [#allocation5], 192
        $region80: #{tpu_custom_call.1} parent=71 // pred_fallthru
          _
        // Predicated region
        $region81: #{tpu_custom_call.1} parent=71 // pred_check
          %p472 = pneg %p263
        $region82: #{tpu_custom_call.1} parent=71 // pred_check_branch
          %474 = sbr.rel (%p472) target = $region84
        $region83: #{tpu_custom_call.1} parent=71 // pred_region
          %476 = dma.done [#allocation5], 16
        $region84: #{tpu_custom_call.1} parent=71 // pred_fallthru
          _
        // Predicated region
        $region85: #{tpu_custom_call.1} parent=71 // pred_check
          %p477 = pneg %p305
        $region86: #{tpu_custom_call.1} parent=71 // pred_check_branch
          %479 = sbr.rel (%p477) target = $region88
        $region87: #{tpu_custom_call.1} parent=71 // pred_region
          %481 = dma.done [#allocation8], 16
        $region88: #{tpu_custom_call.1} parent=71 // pred_fallthru
          _
        %s482 = smul.u32 16, %s27
        %s483 = ssub.s32 25, %s482
        %p484 = scmp.lt.s32.totalorder %s483, 16
        %s485 = scalar_select %p484, %s483, 16
        %s486 = smul.u32 4, %s485
        %p487 = scmp.lt.s32.totalorder %s482, 24
        %s488 = scalar_select %p487, %s482, 24
        %s489 = smul.addr %s488, 4
        %s490 = scalar_lea.vmem %s0, %s489
        %p491 = pneg %p48
        %p492 = pneg %p45
        %s493 = smul.u32 16, %s27
        %s494 = ssub.s32 25, %s493
        %p495 = scmp.lt.s32.totalorder %s494, 16
        %s496 = scalar_select %p495, %s494, 16
        %s497 = smul.u32 4, %s496
        %p498 = scmp.lt.s32.totalorder %s493, 24
        %s499 = scalar_select %p498, %s493, 24
        %s500 = smul.addr %s499, 4
        %s501 = scalar_lea.vmem %s1, %s500
        %p502 = pneg %p74
        %p503 = pneg %p71
        %p504 = pneg %p95
        %p505 = pneg %p92
        %p506 = pneg %p116
        %p507 = pneg %p113
        %p508 = pneg %p137
        %p509 = pneg %p134
        %p510 = pneg %p158
        %p511 = pneg %p155
        %p512 = pneg %p179
        %p513 = pneg %p176
        %p514 = pneg %p200
        %p515 = pneg %p197
        %p516 = pneg %p221
        %p517 = pneg %p218
        %p518 = pneg %p242
        %p519 = pneg %p239
        %p520 = pneg %p263
        %p521 = pneg %p260
        %p522 = pneg %p284
        %p523 = pneg %p281
        %p524 = pneg %p305
        %p525 = pneg %p302
        %p526 = pneg %p331
        %p527 = pneg %p328
        %s528 = sand.u32 %s318, 1
        %s529 = sand.u32 %s318, 1
        %s530 = smul.addr %s529, 128
        %s531 = scalar_lea.vmem [#allocation9], %s530
        %s532 = smul.u32 16, %s27
        %s533 = ssub.s32 25, %s532
        %p534 = scmp.lt.s32.totalorder %s533, 16
        %s535 = scalar_select %p534, %s533, 16
        %s536 = smul.u32 4, %s535
        %p537 = scmp.lt.s32.totalorder %s532, 24
        %s538 = scalar_select %p537, %s532, 24
        %s539 = smul.addr %s538, 4
        %s540 = scalar_lea.vmem %s0, %s539
        %s541 = smul.u32 16, %s27
        %s542 = ssub.s32 25, %s541
        %p543 = scmp.lt.s32.totalorder %s542, 16
        %s544 = scalar_select %p543, %s542, 16
        %s545 = smul.u32 4, %s544
        %s546 = smul.u32 16, %s27
        %s547 = ssub.s32 25, %s546
        %p548 = scmp.lt.s32.totalorder %s547, 16
        %s549 = scalar_select %p548, %s547, 16
        %s550 = smul.u32 4, %s549
        %p551 = scmp.lt.s32.totalorder %s546, 24
        %s552 = scalar_select %p551, %s546, 24
        %s553 = smul.addr %s552, 4
        %s554 = scalar_lea.vmem %s1, %s553
        %s555 = smul.u32 16, %s27
        %s556 = ssub.s32 25, %s555
        %p557 = scmp.lt.s32.totalorder %s556, 16
        %s558 = scalar_select %p557, %s556, 16
        %s559 = smul.u32 4, %s558
        %s560 = smul.u32 16, %s27
        %s561 = ssub.s32 25, %s560
        %p562 = scmp.lt.s32.totalorder %s561, 16
        %s563 = scalar_select %p562, %s561, 16
        %s564 = smul.u32 8, %s563
        %v566 = vld [vmem:[%s540] sm:$0xf]
        %v567 = vld [vmem:[%s540 + $0x4] sm:$0xf]
        %v568 = vld [vmem:[%s540 + $0x8] sm:$0xf]
        %v569 = vld [vmem:[%s540 + $0xc] sm:$0xf]
        %v570 = vld [vmem:[%s540 + $0x10] sm:$0xf]
        %v571 = vld [vmem:[%s540 + $0x14] sm:$0xf]
        %v572 = vld [vmem:[%s540 + $0x18] sm:$0xf]
        %v573 = vld [vmem:[%s540 + $0x1c] sm:$0xf]
        %v574 = vld [vmem:[%s540 + $0x20] sm:$0xf]
        %v575 = vld [vmem:[%s540 + $0x24] sm:$0xf]
        %v576 = vld [vmem:[%s540 + $0x28] sm:$0xf]
        %v577 = vld [vmem:[%s540 + $0x2c] sm:$0xf]
        %v578 = vld [vmem:[%s540 + $0x30] sm:$0xf]
        %v579 = vld [vmem:[%s540 + $0x34] sm:$0xf]
        %v580 = vld [vmem:[%s540 + $0x38] sm:$0xf]
        %v581 = vld [vmem:[%s540 + $0x3c] sm:$0xf]
        %v582 = vld [vmem:[%s554] sm:$0xf]
        %v583 = vld [vmem:[%s554 + $0x4] sm:$0xf]
        %v584 = vld [vmem:[%s554 + $0x8] sm:$0xf]
        %v585 = vld [vmem:[%s554 + $0xc] sm:$0xf]
        %v586 = vld [vmem:[%s554 + $0x10] sm:$0xf]
        %v587 = vld [vmem:[%s554 + $0x14] sm:$0xf]
        %v588 = vld [vmem:[%s554 + $0x18] sm:$0xf]
        %v589 = vld [vmem:[%s554 + $0x1c] sm:$0xf]
        %v590 = vld [vmem:[%s554 + $0x20] sm:$0xf]
        %v591 = vld [vmem:[%s554 + $0x24] sm:$0xf]
        %v592 = vld [vmem:[%s554 + $0x28] sm:$0xf]
        %v593 = vld [vmem:[%s554 + $0x2c] sm:$0xf]
        %v594 = vld [vmem:[%s554 + $0x30] sm:$0xf]
        %v595 = vld [vmem:[%s554 + $0x34] sm:$0xf]
        %v596 = vld [vmem:[%s554 + $0x38] sm:$0xf]
        %v597 = vld [vmem:[%s554 + $0x3c] sm:$0xf]
        %v598 = vld [vmem:[%s2] sm:$0xf]
        %v599 = vld [vmem:[%s2 + $0x4] sm:$0xf]
        %v600 = vld [vmem:[%s2 + $0x8] sm:$0xf]
        %v601 = vld [vmem:[%s2 + $0xc] sm:$0xf]
        %v602 = vld [vmem:[%s2 + $0x10] sm:$0xf]
        %v603 = vld [vmem:[%s2 + $0x14] sm:$0xf]
        %v604 = vld [vmem:[%s5] sm:$0x1]
        %v605 = vperm.slane %v604, 0
        %v622 = vunpack.c.l.b16 %v566
        %v623 = vunpack.c.l.b16 %v567
        %v624 = vunpack.c.l.b16 %v568
        %v625 = vunpack.c.l.b16 %v569
        %v626 = vunpack.c.l.b16 %v570
        %v627 = vunpack.c.l.b16 %v571
        %v628 = vunpack.c.l.b16 %v572
        %v629 = vunpack.c.l.b16 %v573
        %v630 = vunpack.c.l.b16 %v574
        %v631 = vunpack.c.l.b16 %v575
        %v632 = vunpack.c.l.b16 %v576
        %v633 = vunpack.c.l.b16 %v577
        %v634 = vunpack.c.l.b16 %v578
        %v635 = vunpack.c.l.b16 %v579
        %v636 = vunpack.c.l.b16 %v580
        %v637 = vunpack.c.l.b16 %v581
        %v638 = vpack.c.b16 %v623, %v622
        %v639 = vpack.c.b16 %v625, %v624
        %v640 = vpack.c.b16 %v627, %v626
        %v641 = vpack.c.b16 %v629, %v628
        %v642 = vpack.c.b16 %v631, %v630
        %v643 = vpack.c.b16 %v633, %v632
        %v644 = vpack.c.b16 %v635, %v634
        %v645 = vpack.c.b16 %v637, %v636
        %v652 = vunpack.c.l.b16 %v598
        %v653 = vunpack.c.l.b16 %v599
        %v654 = vunpack.c.l.b16 %v600
        %v655 = vunpack.c.l.b16 %v601
        %v656 = vunpack.c.l.b16 %v602
        %v657 = vunpack.c.l.b16 %v603
        %v658 = vpack.c.b16 %v653, %v652
        %v659 = vpack.c.b16 %v655, %v654
        %v660 = vpack.c.b16 %v657, %v656
        %vm664 = vcmask 392192
        %v666 = vsel %vm664, %v638, 0
        %v669 = vsel %vm664, %v639, 0
        %v672 = vsel %vm664, %v640, 0
        %v675 = vsel %vm664, %v641, 0
        %v678 = vsel %vm664, %v642, 0
        %v681 = vsel %vm664, %v643, 0
        %v684 = vsel %vm664, %v644, 0
        %v687 = vsel %vm664, %v645, 0
        %689 = vmatpush.bf16.msra.mxu0 0
        %690 = vmatpush.bf16.msra.mxu0 0
        %691 = vmatpush.bf16.msra.mxu0 0
        %692 = vmatpush.bf16.msra.mxu0 0
        %693 = vmatpush.bf16.msra.mxu0 0
        %694 = vmatpush.bf16.msra.mxu0 %v660
        %695 = vmatpush.bf16.msra.mxu0 %v659
        %696 = vmatpush.bf16.msra.mxu0 %v658
        %697 = vmatmul.bf16.gmra.mxu0 %v666
        %v698 = vpop.f32.mrf.mxu0
        %v699 = vadd.f32 %v605, %v698
        %v700 = vpop.f32.mrf.mxu0
        %v701 = vadd.f32 %v605, %v700
        %702 = vmatmul.bf16.gmra.mxu0 %v669
        %v703 = vpop.f32.mrf.mxu0
        %v704 = vadd.f32 %v605, %v703
        %v705 = vpop.f32.mrf.mxu0
        %v706 = vadd.f32 %v605, %v705
        %707 = vmatmul.bf16.gmra.mxu0 %v672
        %v708 = vpop.f32.mrf.mxu0
        %v709 = vadd.f32 %v605, %v708
        %v710 = vpop.f32.mrf.mxu0
        %v711 = vadd.f32 %v605, %v710
        %712 = vmatmul.bf16.gmra.mxu0 %v675
        %v713 = vpop.f32.mrf.mxu0
        %v714 = vadd.f32 %v605, %v713
        %v715 = vpop.f32.mrf.mxu0
        %v716 = vadd.f32 %v605, %v715
        %717 = vmatmul.bf16.gmra.mxu0 %v678
        %v718 = vpop.f32.mrf.mxu0
        %v719 = vadd.f32 %v605, %v718
        %v720 = vpop.f32.mrf.mxu0
        %v721 = vadd.f32 %v605, %v720
        %722 = vmatmul.bf16.gmra.mxu0 %v681
        %v723 = vpop.f32.mrf.mxu0
        %v724 = vadd.f32 %v605, %v723
        %v725 = vpop.f32.mrf.mxu0
        %v726 = vadd.f32 %v605, %v725
        %727 = vmatmul.bf16.gmra.mxu0 %v684
        %v728 = vpop.f32.mrf.mxu0
        %v729 = vadd.f32 %v605, %v728
        %v730 = vpop.f32.mrf.mxu0
        %v731 = vadd.f32 %v605, %v730
        %732 = vmatmul.bf16.gmra.mxu0 %v687
        %v733 = vpop.f32.mrf.mxu0
        %v734 = vadd.f32 %v605, %v733
        %v735 = vpop.f32.mrf.mxu0
        %v736 = vadd.f32 %v605, %v735
        %737 = vdwg.mxu0
        %v738 = vmax.f32 %v699, 0.0
        %v739 = vmax.f32 %v701, 0.0
        %v740 = vmax.f32 %v704, 0.0
        %v741 = vmax.f32 %v706, 0.0
        %v742 = vmax.f32 %v709, 0.0
        %v743 = vmax.f32 %v711, 0.0
        %v744 = vmax.f32 %v714, 0.0
        %v745 = vmax.f32 %v716, 0.0
        %v746 = vmax.f32 %v719, 0.0
        %v747 = vmax.f32 %v721, 0.0
        %v748 = vmax.f32 %v724, 0.0
        %v749 = vmax.f32 %v726, 0.0
        %v750 = vmax.f32 %v729, 0.0
        %v751 = vmax.f32 %v731, 0.0
        %v752 = vmax.f32 %v734, 0.0
        %v753 = vmax.f32 %v736, 0.0
        %v754 = vpack.c.bf16 %v739, %v738
        %v755 = vpack.c.bf16 %v741, %v740
        %v756 = vpack.c.bf16 %v743, %v742
        %v757 = vpack.c.bf16 %v745, %v744
        %v758 = vpack.c.bf16 %v747, %v746
        %v759 = vpack.c.bf16 %v749, %v748
        %v760 = vpack.c.bf16 %v751, %v750
        %v761 = vpack.c.bf16 %v753, %v752
        %v762 = vld [vmem:[%s3] sm:$0xf]
        %v763 = vld [vmem:[%s3 + $0x4] sm:$0xf]
        %v764 = vld [vmem:[%s3 + $0x8] sm:$0xf]
        %v765 = vld [vmem:[%s3 + $0xc] sm:$0xf]
        %v766 = vld [vmem:[%s3 + $0x10] sm:$0xf]
        %v767 = vld [vmem:[%s3 + $0x14] sm:$0xf]
        %v768 = vld [vmem:[%s3 + $0x18] sm:$0xf]
        %v769 = vld [vmem:[%s3 + $0x1c] sm:$0xf]
        %v770 = vld [vmem:[%s3 + $0x20] sm:$0xf]
        %v771 = vld [vmem:[%s3 + $0x24] sm:$0xf]
        %v772 = vld [vmem:[%s3 + $0x28] sm:$0xf]
        %v773 = vld [vmem:[%s3 + $0x2c] sm:$0xf]
        %v774 = vld [vmem:[%s3 + $0x30] sm:$0xf]
        %v775 = vld [vmem:[%s3 + $0x34] sm:$0xf]
        %v776 = vld [vmem:[%s3 + $0x38] sm:$0xf]
        %v777 = vld [vmem:[%s3 + $0x3c] sm:$0xf]
        %v778 = vld [vmem:[%s5 + $0x1] sm:$0x1]
        %v779 = vperm.slane %v778, 0
        %v796 = vunpack.c.l.b16 %v762
        %v797 = vunpack.c.l.b16 %v763
        %v798 = vunpack.c.l.b16 %v764
        %v799 = vunpack.c.l.b16 %v765
        %v800 = vunpack.c.l.b16 %v766
        %v801 = vunpack.c.l.b16 %v767
        %v802 = vunpack.c.l.b16 %v768
        %v803 = vunpack.c.l.b16 %v769
        %v804 = vunpack.c.l.b16 %v770
        %v805 = vunpack.c.l.b16 %v771
        %v806 = vunpack.c.l.b16 %v772
        %v807 = vunpack.c.l.b16 %v773
        %v808 = vunpack.c.l.b16 %v774
        %v809 = vunpack.c.l.b16 %v775
        %v810 = vunpack.c.l.b16 %v776
        %v811 = vunpack.c.l.b16 %v777
        %v812 = vpack.c.b16 %v797, %v796
        %v813 = vpack.c.b16 %v799, %v798
        %v814 = vpack.c.b16 %v801, %v800
        %v815 = vpack.c.b16 %v803, %v802
        %v816 = vpack.c.b16 %v805, %v804
        %v817 = vpack.c.b16 %v807, %v806
        %v818 = vpack.c.b16 %v809, %v808
        %v819 = vpack.c.b16 %v811, %v810
        %828 = vmatpush.bf16.msra.mxu0 %v819
        %829 = vmatpush.bf16.msra.mxu0 %v818
        %830 = vmatpush.bf16.msra.mxu0 %v817
        %831 = vmatpush.bf16.msra.mxu0 %v816
        %832 = vmatpush.bf16.msra.mxu0 %v815
        %833 = vmatpush.bf16.msra.mxu0 %v814
        %834 = vmatpush.bf16.msra.mxu0 %v813
        %835 = vmatpush.bf16.msra.mxu0 %v812
        %836 = vmatmul.bf16.gmra.mxu0 %v754
        %v837 = vpop.f32.mrf.mxu0
        %v838 = vadd.f32 %v779, %v837
        %v839 = vpop.f32.mrf.mxu0
        %v840 = vadd.f32 %v779, %v839
        %841 = vmatmul.bf16.gmra.mxu0 %v755
        %v842 = vpop.f32.mrf.mxu0
        %v843 = vadd.f32 %v779, %v842
        %v844 = vpop.f32.mrf.mxu0
        %v845 = vadd.f32 %v779, %v844
        %846 = vmatmul.bf16.gmra.mxu0 %v756
        %v847 = vpop.f32.mrf.mxu0
        %v848 = vadd.f32 %v779, %v847
        %v849 = vpop.f32.mrf.mxu0
        %v850 = vadd.f32 %v779, %v849
        %851 = vmatmul.bf16.gmra.mxu0 %v757
        %v852 = vpop.f32.mrf.mxu0
        %v853 = vadd.f32 %v779, %v852
        %v854 = vpop.f32.mrf.mxu0
        %v855 = vadd.f32 %v779, %v854
        %856 = vmatmul.bf16.gmra.mxu0 %v758
        %v857 = vpop.f32.mrf.mxu0
        %v858 = vadd.f32 %v779, %v857
        %v859 = vpop.f32.mrf.mxu0
        %v860 = vadd.f32 %v779, %v859
        %861 = vmatmul.bf16.gmra.mxu0 %v759
        %v862 = vpop.f32.mrf.mxu0
        %v863 = vadd.f32 %v779, %v862
        %v864 = vpop.f32.mrf.mxu0
        %v865 = vadd.f32 %v779, %v864
        %866 = vmatmul.bf16.gmra.mxu0 %v760
        %v867 = vpop.f32.mrf.mxu0
        %v868 = vadd.f32 %v779, %v867
        %v869 = vpop.f32.mrf.mxu0
        %v870 = vadd.f32 %v779, %v869
        %871 = vmatmul.bf16.gmra.mxu0 %v761
        %v872 = vpop.f32.mrf.mxu0
        %v873 = vadd.f32 %v779, %v872
        %v874 = vpop.f32.mrf.mxu0
        %v875 = vadd.f32 %v779, %v874
        %876 = vdwg.mxu0
        %v877 = vmax.f32 %v838, 0.0
        %v878 = vmax.f32 %v840, 0.0
        %v879 = vmax.f32 %v843, 0.0
        %v880 = vmax.f32 %v845, 0.0
        %v881 = vmax.f32 %v848, 0.0
        %v882 = vmax.f32 %v850, 0.0
        %v883 = vmax.f32 %v853, 0.0
        %v884 = vmax.f32 %v855, 0.0
        %v885 = vmax.f32 %v858, 0.0
        %v886 = vmax.f32 %v860, 0.0
        %v887 = vmax.f32 %v863, 0.0
        %v888 = vmax.f32 %v865, 0.0
        %v889 = vmax.f32 %v868, 0.0
        %v890 = vmax.f32 %v870, 0.0
        %v891 = vmax.f32 %v873, 0.0
        %v892 = vmax.f32 %v875, 0.0
        %v893 = vpack.c.bf16 %v878, %v877
        %v894 = vpack.c.bf16 %v880, %v879
        %v895 = vpack.c.bf16 %v882, %v881
        %v896 = vpack.c.bf16 %v884, %v883
        %v897 = vpack.c.bf16 %v886, %v885
        %v898 = vpack.c.bf16 %v888, %v887
        %v899 = vpack.c.bf16 %v890, %v889
        %v900 = vpack.c.bf16 %v892, %v891
        %s901 = scalar_lea.vmem %s3, 64
        %v902 = vld [vmem:[%s901] sm:$0xf]
        %v903 = vld [vmem:[%s901 + $0x4] sm:$0xf]
        %v904 = vld [vmem:[%s901 + $0x8] sm:$0xf]
        %v905 = vld [vmem:[%s901 + $0xc] sm:$0xf]
        %v906 = vld [vmem:[%s901 + $0x10] sm:$0xf]
        %v907 = vld [vmem:[%s901 + $0x14] sm:$0xf]
        %v908 = vld [vmem:[%s901 + $0x18] sm:$0xf]
        %v909 = vld [vmem:[%s901 + $0x1c] sm:$0xf]
        %v910 = vld [vmem:[%s901 + $0x20] sm:$0xf]
        %v911 = vld [vmem:[%s901 + $0x24] sm:$0xf]
        %v912 = vld [vmem:[%s901 + $0x28] sm:$0xf]
        %v913 = vld [vmem:[%s901 + $0x2c] sm:$0xf]
        %v914 = vld [vmem:[%s901 + $0x30] sm:$0xf]
        %v915 = vld [vmem:[%s901 + $0x34] sm:$0xf]
        %v916 = vld [vmem:[%s901 + $0x38] sm:$0xf]
        %v917 = vld [vmem:[%s901 + $0x3c] sm:$0xf]
        %v918 = vld [vmem:[%s5 + $0x2] sm:$0x1]
        %v919 = vperm.slane %v918, 0
        %v936 = vunpack.c.l.b16 %v902
        %v937 = vunpack.c.l.b16 %v903
        %v938 = vunpack.c.l.b16 %v904
        %v939 = vunpack.c.l.b16 %v905
        %v940 = vunpack.c.l.b16 %v906
        %v941 = vunpack.c.l.b16 %v907
        %v942 = vunpack.c.l.b16 %v908
        %v943 = vunpack.c.l.b16 %v909
        %v944 = vunpack.c.l.b16 %v910
        %v945 = vunpack.c.l.b16 %v911
        %v946 = vunpack.c.l.b16 %v912
        %v947 = vunpack.c.l.b16 %v913
        %v948 = vunpack.c.l.b16 %v914
        %v949 = vunpack.c.l.b16 %v915
        %v950 = vunpack.c.l.b16 %v916
        %v951 = vunpack.c.l.b16 %v917
        %v952 = vpack.c.b16 %v937, %v936
        %v953 = vpack.c.b16 %v939, %v938
        %v954 = vpack.c.b16 %v941, %v940
        %v955 = vpack.c.b16 %v943, %v942
        %v956 = vpack.c.b16 %v945, %v944
        %v957 = vpack.c.b16 %v947, %v946
        %v958 = vpack.c.b16 %v949, %v948
        %v959 = vpack.c.b16 %v951, %v950
        %968 = vmatpush.bf16.msra.mxu0 %v959
        %969 = vmatpush.bf16.msra.mxu0 %v958
        %970 = vmatpush.bf16.msra.mxu0 %v957
        %971 = vmatpush.bf16.msra.mxu0 %v956
        %972 = vmatpush.bf16.msra.mxu0 %v955
        %973 = vmatpush.bf16.msra.mxu0 %v954
        %974 = vmatpush.bf16.msra.mxu0 %v953
        %975 = vmatpush.bf16.msra.mxu0 %v952
        %976 = vmatmul.bf16.gmra.mxu0 %v893
        %v977 = vpop.f32.mrf.mxu0
        %v978 = vadd.f32 %v919, %v977
        %v979 = vpop.f32.mrf.mxu0
        %v980 = vadd.f32 %v919, %v979
        %981 = vmatmul.bf16.gmra.mxu0 %v894
        %v982 = vpop.f32.mrf.mxu0
        %v983 = vadd.f32 %v919, %v982
        %v984 = vpop.f32.mrf.mxu0
        %v985 = vadd.f32 %v919, %v984
        %986 = vmatmul.bf16.gmra.mxu0 %v895
        %v987 = vpop.f32.mrf.mxu0
        %v988 = vadd.f32 %v919, %v987
        %v989 = vpop.f32.mrf.mxu0
        %v990 = vadd.f32 %v919, %v989
        %991 = vmatmul.bf16.gmra.mxu0 %v896
        %v992 = vpop.f32.mrf.mxu0
        %v993 = vadd.f32 %v919, %v992
        %v994 = vpop.f32.mrf.mxu0
        %v995 = vadd.f32 %v919, %v994
        %996 = vmatmul.bf16.gmra.mxu0 %v897
        %v997 = vpop.f32.mrf.mxu0
        %v998 = vadd.f32 %v919, %v997
        %v999 = vpop.f32.mrf.mxu0
        %v1000 = vadd.f32 %v919, %v999
        %1001 = vmatmul.bf16.gmra.mxu0 %v898
        %v1002 = vpop.f32.mrf.mxu0
        %v1003 = vadd.f32 %v919, %v1002
        %v1004 = vpop.f32.mrf.mxu0
        %v1005 = vadd.f32 %v919, %v1004
        %1006 = vmatmul.bf16.gmra.mxu0 %v899
        %v1007 = vpop.f32.mrf.mxu0
        %v1008 = vadd.f32 %v919, %v1007
        %v1009 = vpop.f32.mrf.mxu0
        %v1010 = vadd.f32 %v919, %v1009
        %1011 = vmatmul.bf16.gmra.mxu0 %v900
        %v1012 = vpop.f32.mrf.mxu0
        %v1013 = vadd.f32 %v919, %v1012
        %v1014 = vpop.f32.mrf.mxu0
        %v1015 = vadd.f32 %v919, %v1014
        %1016 = vdwg.mxu0
        %v1017 = vmax.f32 %v978, 0.0
        %v1018 = vmax.f32 %v980, 0.0
        %v1019 = vmax.f32 %v983, 0.0
        %v1020 = vmax.f32 %v985, 0.0
        %v1021 = vmax.f32 %v988, 0.0
        %v1022 = vmax.f32 %v990, 0.0
        %v1023 = vmax.f32 %v993, 0.0
        %v1024 = vmax.f32 %v995, 0.0
        %v1025 = vmax.f32 %v998, 0.0
        %v1026 = vmax.f32 %v1000, 0.0
        %v1027 = vmax.f32 %v1003, 0.0
        %v1028 = vmax.f32 %v1005, 0.0
        %v1029 = vmax.f32 %v1008, 0.0
        %v1030 = vmax.f32 %v1010, 0.0
        %v1031 = vmax.f32 %v1013, 0.0
        %v1032 = vmax.f32 %v1015, 0.0
        %v1033 = vpack.c.bf16 %v1018, %v1017
        %v1034 = vpack.c.bf16 %v1020, %v1019
        %v1035 = vpack.c.bf16 %v1022, %v1021
        %v1036 = vpack.c.bf16 %v1024, %v1023
        %v1037 = vpack.c.bf16 %v1026, %v1025
        %v1038 = vpack.c.bf16 %v1028, %v1027
        %v1039 = vpack.c.bf16 %v1030, %v1029
        %v1040 = vpack.c.bf16 %v1032, %v1031
        %s1041 = scalar_lea.vmem %s3, 128
        %v1042 = vld [vmem:[%s1041] sm:$0xf]
        %v1043 = vld [vmem:[%s1041 + $0x4] sm:$0xf]
        %v1044 = vld [vmem:[%s1041 + $0x8] sm:$0xf]
        %v1045 = vld [vmem:[%s1041 + $0xc] sm:$0xf]
        %v1046 = vld [vmem:[%s1041 + $0x10] sm:$0xf]
        %v1047 = vld [vmem:[%s1041 + $0x14] sm:$0xf]
        %v1048 = vld [vmem:[%s1041 + $0x18] sm:$0xf]
        %v1049 = vld [vmem:[%s1041 + $0x1c] sm:$0xf]
        %v1050 = vld [vmem:[%s1041 + $0x20] sm:$0xf]
        %v1051 = vld [vmem:[%s1041 + $0x24] sm:$0xf]
        %v1052 = vld [vmem:[%s1041 + $0x28] sm:$0xf]
        %v1053 = vld [vmem:[%s1041 + $0x2c] sm:$0xf]
        %v1054 = vld [vmem:[%s1041 + $0x30] sm:$0xf]
        %v1055 = vld [vmem:[%s1041 + $0x34] sm:$0xf]
        %v1056 = vld [vmem:[%s1041 + $0x38] sm:$0xf]
        %v1057 = vld [vmem:[%s1041 + $0x3c] sm:$0xf]
        %v1058 = vld [vmem:[%s5 + $0x3] sm:$0x1]
        %v1059 = vperm.slane %v1058, 0
        %v1076 = vunpack.c.l.b16 %v1042
        %v1077 = vunpack.c.l.b16 %v1043
        %v1078 = vunpack.c.l.b16 %v1044
        %v1079 = vunpack.c.l.b16 %v1045
        %v1080 = vunpack.c.l.b16 %v1046
        %v1081 = vunpack.c.l.b16 %v1047
        %v1082 = vunpack.c.l.b16 %v1048
        %v1083 = vunpack.c.l.b16 %v1049
        %v1084 = vunpack.c.l.b16 %v1050
        %v1085 = vunpack.c.l.b16 %v1051
        %v1086 = vunpack.c.l.b16 %v1052
        %v1087 = vunpack.c.l.b16 %v1053
        %v1088 = vunpack.c.l.b16 %v1054
        %v1089 = vunpack.c.l.b16 %v1055
        %v1090 = vunpack.c.l.b16 %v1056
        %v1091 = vunpack.c.l.b16 %v1057
        %v1092 = vpack.c.b16 %v1077, %v1076
        %v1093 = vpack.c.b16 %v1079, %v1078
        %v1094 = vpack.c.b16 %v1081, %v1080
        %v1095 = vpack.c.b16 %v1083, %v1082
        %v1096 = vpack.c.b16 %v1085, %v1084
        %v1097 = vpack.c.b16 %v1087, %v1086
        %v1098 = vpack.c.b16 %v1089, %v1088
        %v1099 = vpack.c.b16 %v1091, %v1090
        %1108 = vmatpush.bf16.msra.mxu0 %v1099
        %1109 = vmatpush.bf16.msra.mxu0 %v1098
        %1110 = vmatpush.bf16.msra.mxu0 %v1097
        %1111 = vmatpush.bf16.msra.mxu0 %v1096
        %1112 = vmatpush.bf16.msra.mxu0 %v1095
        %1113 = vmatpush.bf16.msra.mxu0 %v1094
        %1114 = vmatpush.bf16.msra.mxu0 %v1093
        %1115 = vmatpush.bf16.msra.mxu0 %v1092
        %1116 = vmatmul.bf16.gmra.mxu0 %v1033
        %v1117 = vpop.f32.mrf.mxu0
        %v1118 = vadd.f32 %v1059, %v1117
        %v1119 = vpop.f32.mrf.mxu0
        %v1120 = vadd.f32 %v1059, %v1119
        %1121 = vmatmul.bf16.gmra.mxu0 %v1034
        %v1122 = vpop.f32.mrf.mxu0
        %v1123 = vadd.f32 %v1059, %v1122
        %v1124 = vpop.f32.mrf.mxu0
        %v1125 = vadd.f32 %v1059, %v1124
        %1126 = vmatmul.bf16.gmra.mxu0 %v1035
        %v1127 = vpop.f32.mrf.mxu0
        %v1128 = vadd.f32 %v1059, %v1127
        %v1129 = vpop.f32.mrf.mxu0
        %v1130 = vadd.f32 %v1059, %v1129
        %1131 = vmatmul.bf16.gmra.mxu0 %v1036
        %v1132 = vpop.f32.mrf.mxu0
        %v1133 = vadd.f32 %v1059, %v1132
        %v1134 = vpop.f32.mrf.mxu0
        %v1135 = vadd.f32 %v1059, %v1134
        %1136 = vmatmul.bf16.gmra.mxu0 %v1037
        %v1137 = vpop.f32.mrf.mxu0
        %v1138 = vadd.f32 %v1059, %v1137
        %v1139 = vpop.f32.mrf.mxu0
        %v1140 = vadd.f32 %v1059, %v1139
        %1141 = vmatmul.bf16.gmra.mxu0 %v1038
        %v1142 = vpop.f32.mrf.mxu0
        %v1143 = vadd.f32 %v1059, %v1142
        %v1144 = vpop.f32.mrf.mxu0
        %v1145 = vadd.f32 %v1059, %v1144
        %1146 = vmatmul.bf16.gmra.mxu0 %v1039
        %v1147 = vpop.f32.mrf.mxu0
        %v1148 = vadd.f32 %v1059, %v1147
        %v1149 = vpop.f32.mrf.mxu0
        %v1150 = vadd.f32 %v1059, %v1149
        %1151 = vmatmul.bf16.gmra.mxu0 %v1040
        %v1152 = vpop.f32.mrf.mxu0
        %v1153 = vadd.f32 %v1059, %v1152
        %v1154 = vpop.f32.mrf.mxu0
        %v1155 = vadd.f32 %v1059, %v1154
        %1156 = vdwg.mxu0
        %v1157 = vmax.f32 %v1118, 0.0
        %v1158 = vmax.f32 %v1120, 0.0
        %v1159 = vmax.f32 %v1123, 0.0
        %v1160 = vmax.f32 %v1125, 0.0
        %v1161 = vmax.f32 %v1128, 0.0
        %v1162 = vmax.f32 %v1130, 0.0
        %v1163 = vmax.f32 %v1133, 0.0
        %v1164 = vmax.f32 %v1135, 0.0
        %v1165 = vmax.f32 %v1138, 0.0
        %v1166 = vmax.f32 %v1140, 0.0
        %v1167 = vmax.f32 %v1143, 0.0
        %v1168 = vmax.f32 %v1145, 0.0
        %v1169 = vmax.f32 %v1148, 0.0
        %v1170 = vmax.f32 %v1150, 0.0
        %v1171 = vmax.f32 %v1153, 0.0
        %v1172 = vmax.f32 %v1155, 0.0
        %v1173 = vpack.c.bf16 %v1158, %v1157
        %v1174 = vpack.c.bf16 %v1160, %v1159
        %v1175 = vpack.c.bf16 %v1162, %v1161
        %v1176 = vpack.c.bf16 %v1164, %v1163
        %v1177 = vpack.c.bf16 %v1166, %v1165
        %v1178 = vpack.c.bf16 %v1168, %v1167
        %v1179 = vpack.c.bf16 %v1170, %v1169
        %v1180 = vpack.c.bf16 %v1172, %v1171
        %s1181 = scalar_lea.vmem %s3, 192
        %v1182 = vld [vmem:[%s1181] sm:$0xf]
        %v1183 = vld [vmem:[%s1181 + $0x4] sm:$0xf]
        %v1184 = vld [vmem:[%s1181 + $0x8] sm:$0xf]
        %v1185 = vld [vmem:[%s1181 + $0xc] sm:$0xf]
        %v1186 = vld [vmem:[%s1181 + $0x10] sm:$0xf]
        %v1187 = vld [vmem:[%s1181 + $0x14] sm:$0xf]
        %v1188 = vld [vmem:[%s1181 + $0x18] sm:$0xf]
        %v1189 = vld [vmem:[%s1181 + $0x1c] sm:$0xf]
        %v1190 = vld [vmem:[%s1181 + $0x20] sm:$0xf]
        %v1191 = vld [vmem:[%s1181 + $0x24] sm:$0xf]
        %v1192 = vld [vmem:[%s1181 + $0x28] sm:$0xf]
        %v1193 = vld [vmem:[%s1181 + $0x2c] sm:$0xf]
        %v1194 = vld [vmem:[%s1181 + $0x30] sm:$0xf]
        %v1195 = vld [vmem:[%s1181 + $0x34] sm:$0xf]
        %v1196 = vld [vmem:[%s1181 + $0x38] sm:$0xf]
        %v1197 = vld [vmem:[%s1181 + $0x3c] sm:$0xf]
        %v1198 = vld [vmem:[%s5 + $0x4] sm:$0x1]
        %v1199 = vperm.slane %v1198, 0
        %v1216 = vunpack.c.l.b16 %v1182
        %v1217 = vunpack.c.l.b16 %v1183
        %v1218 = vunpack.c.l.b16 %v1184
        %v1219 = vunpack.c.l.b16 %v1185
        %v1220 = vunpack.c.l.b16 %v1186
        %v1221 = vunpack.c.l.b16 %v1187
        %v1222 = vunpack.c.l.b16 %v1188
        %v1223 = vunpack.c.l.b16 %v1189
        %v1224 = vunpack.c.l.b16 %v1190
        %v1225 = vunpack.c.l.b16 %v1191
        %v1226 = vunpack.c.l.b16 %v1192
        %v1227 = vunpack.c.l.b16 %v1193
        %v1228 = vunpack.c.l.b16 %v1194
        %v1229 = vunpack.c.l.b16 %v1195
        %v1230 = vunpack.c.l.b16 %v1196
        %v1231 = vunpack.c.l.b16 %v1197
        %v1232 = vpack.c.b16 %v1217, %v1216
        %v1233 = vpack.c.b16 %v1219, %v1218
        %v1234 = vpack.c.b16 %v1221, %v1220
        %v1235 = vpack.c.b16 %v1223, %v1222
        %v1236 = vpack.c.b16 %v1225, %v1224
        %v1237 = vpack.c.b16 %v1227, %v1226
        %v1238 = vpack.c.b16 %v1229, %v1228
        %v1239 = vpack.c.b16 %v1231, %v1230
        %1248 = vmatpush.bf16.msra.mxu0 %v1239
        %1249 = vmatpush.bf16.msra.mxu0 %v1238
        %1250 = vmatpush.bf16.msra.mxu0 %v1237
        %1251 = vmatpush.bf16.msra.mxu0 %v1236
        %1252 = vmatpush.bf16.msra.mxu0 %v1235
        %1253 = vmatpush.bf16.msra.mxu0 %v1234
        %1254 = vmatpush.bf16.msra.mxu0 %v1233
        %1255 = vmatpush.bf16.msra.mxu0 %v1232
        %1256 = vmatmul.bf16.gmra.mxu0 %v1173
        %v1257 = vpop.f32.mrf.mxu0
        %v1258 = vadd.f32 %v1199, %v1257
        %v1259 = vpop.f32.mrf.mxu0
        %v1260 = vadd.f32 %v1199, %v1259
        %1261 = vmatmul.bf16.gmra.mxu0 %v1174
        %v1262 = vpop.f32.mrf.mxu0
        %v1263 = vadd.f32 %v1199, %v1262
        %v1264 = vpop.f32.mrf.mxu0
        %v1265 = vadd.f32 %v1199, %v1264
        %1266 = vmatmul.bf16.gmra.mxu0 %v1175
        %v1267 = vpop.f32.mrf.mxu0
        %v1268 = vadd.f32 %v1199, %v1267
        %v1269 = vpop.f32.mrf.mxu0
        %v1270 = vadd.f32 %v1199, %v1269
        %1271 = vmatmul.bf16.gmra.mxu0 %v1176
        %v1272 = vpop.f32.mrf.mxu0
        %v1273 = vadd.f32 %v1199, %v1272
        %v1274 = vpop.f32.mrf.mxu0
        %v1275 = vadd.f32 %v1199, %v1274
        %1276 = vmatmul.bf16.gmra.mxu0 %v1177
        %v1277 = vpop.f32.mrf.mxu0
        %v1278 = vadd.f32 %v1199, %v1277
        %v1279 = vpop.f32.mrf.mxu0
        %v1280 = vadd.f32 %v1199, %v1279
        %1281 = vmatmul.bf16.gmra.mxu0 %v1178
        %v1282 = vpop.f32.mrf.mxu0
        %v1283 = vadd.f32 %v1199, %v1282
        %v1284 = vpop.f32.mrf.mxu0
        %v1285 = vadd.f32 %v1199, %v1284
        %1286 = vmatmul.bf16.gmra.mxu0 %v1179
        %v1287 = vpop.f32.mrf.mxu0
        %v1288 = vadd.f32 %v1199, %v1287
        %v1289 = vpop.f32.mrf.mxu0
        %v1290 = vadd.f32 %v1199, %v1289
        %1291 = vmatmul.bf16.gmra.mxu0 %v1180
        %v1292 = vpop.f32.mrf.mxu0
        %v1293 = vadd.f32 %v1199, %v1292
        %v1294 = vpop.f32.mrf.mxu0
        %v1295 = vadd.f32 %v1199, %v1294
        %1296 = vdwg.mxu0
        %v1297 = vmax.f32 %v1258, 0.0
        %v1298 = vmax.f32 %v1260, 0.0
        %v1299 = vmax.f32 %v1263, 0.0
        %v1300 = vmax.f32 %v1265, 0.0
        %v1301 = vmax.f32 %v1268, 0.0
        %v1302 = vmax.f32 %v1270, 0.0
        %v1303 = vmax.f32 %v1273, 0.0
        %v1304 = vmax.f32 %v1275, 0.0
        %v1305 = vmax.f32 %v1278, 0.0
        %v1306 = vmax.f32 %v1280, 0.0
        %v1307 = vmax.f32 %v1283, 0.0
        %v1308 = vmax.f32 %v1285, 0.0
        %v1309 = vmax.f32 %v1288, 0.0
        %v1310 = vmax.f32 %v1290, 0.0
        %v1311 = vmax.f32 %v1293, 0.0
        %v1312 = vmax.f32 %v1295, 0.0
        %v1313 = vpack.c.bf16 %v1298, %v1297
        %v1314 = vpack.c.bf16 %v1300, %v1299
        %v1315 = vpack.c.bf16 %v1302, %v1301
        %v1316 = vpack.c.bf16 %v1304, %v1303
        %v1317 = vpack.c.bf16 %v1306, %v1305
        %v1318 = vpack.c.bf16 %v1308, %v1307
        %v1319 = vpack.c.bf16 %v1310, %v1309
        %v1320 = vpack.c.bf16 %v1312, %v1311
        %s1321 = scalar_lea.vmem %s3, 256
        %v1322 = vld [vmem:[%s1321] sm:$0xf]
        %v1323 = vld [vmem:[%s1321 + $0x4] sm:$0xf]
        %v1324 = vld [vmem:[%s1321 + $0x8] sm:$0xf]
        %v1325 = vld [vmem:[%s1321 + $0xc] sm:$0xf]
        %v1326 = vld [vmem:[%s1321 + $0x10] sm:$0xf]
        %v1327 = vld [vmem:[%s1321 + $0x14] sm:$0xf]
        %v1328 = vld [vmem:[%s1321 + $0x18] sm:$0xf]
        %v1329 = vld [vmem:[%s1321 + $0x1c] sm:$0xf]
        %v1330 = vld [vmem:[%s1321 + $0x20] sm:$0xf]
        %v1331 = vld [vmem:[%s1321 + $0x24] sm:$0xf]
        %v1332 = vld [vmem:[%s1321 + $0x28] sm:$0xf]
        %v1333 = vld [vmem:[%s1321 + $0x2c] sm:$0xf]
        %v1334 = vld [vmem:[%s1321 + $0x30] sm:$0xf]
        %v1335 = vld [vmem:[%s1321 + $0x34] sm:$0xf]
        %v1336 = vld [vmem:[%s1321 + $0x38] sm:$0xf]
        %v1337 = vld [vmem:[%s1321 + $0x3c] sm:$0xf]
        %v1338 = vld [vmem:[%s4] sm:$0xf]
        %v1339 = vld [vmem:[%s4 + $0x4] sm:$0xf]
        %v1340 = vld [vmem:[%s4 + $0x8] sm:$0xf]
        %v1341 = vld [vmem:[%s4 + $0xc] sm:$0xf]
        %v1342 = vld [vmem:[%s4 + $0x10] sm:$0xf]
        %v1343 = vld [vmem:[%s4 + $0x14] sm:$0xf]
        %v1350 = vunpack.c.l.b16 %v1338
        %v1351 = vunpack.c.l.b16 %v1339
        %v1352 = vunpack.c.l.b16 %v1340
        %v1353 = vunpack.c.l.b16 %v1341
        %v1354 = vunpack.c.l.b16 %v1342
        %v1355 = vunpack.c.l.b16 %v1343
        %v1356 = vpack.c.b16 %v1351, %v1350
        %v1357 = vpack.c.b16 %v1353, %v1352
        %v1358 = vpack.c.b16 %v1355, %v1354
        %1362 = vmatpush.bf16.msra.mxu0 0
        %1363 = vmatpush.bf16.msra.mxu0 0
        %1364 = vmatpush.bf16.msra.mxu0 0
        %1365 = vmatpush.bf16.msra.mxu0 0
        %1366 = vmatpush.bf16.msra.mxu0 0
        %1367 = vmatpush.bf16.msra.mxu0 %v1358
        %1368 = vmatpush.bf16.msra.mxu0 %v1357
        %1369 = vmatpush.bf16.msra.mxu0 %v1356
        %1370 = vmatmul.bf16.gmra.mxu0 %v666
        %v1371 = vpop.f32.mrf.mxu0
        %v1372 = vadd.f32 0.0, %v1371
        %v1373 = vpop.f32.mrf.mxu0
        %v1374 = vadd.f32 0.0, %v1373
        %1375 = vmatmul.bf16.gmra.mxu0 %v669
        %v1376 = vpop.f32.mrf.mxu0
        %v1377 = vadd.f32 0.0, %v1376
        %v1378 = vpop.f32.mrf.mxu0
        %v1379 = vadd.f32 0.0, %v1378
        %1380 = vmatmul.bf16.gmra.mxu0 %v672
        %v1381 = vpop.f32.mrf.mxu0
        %v1382 = vadd.f32 0.0, %v1381
        %v1383 = vpop.f32.mrf.mxu0
        %v1384 = vadd.f32 0.0, %v1383
        %1385 = vmatmul.bf16.gmra.mxu0 %v675
        %v1386 = vpop.f32.mrf.mxu0
        %v1387 = vadd.f32 0.0, %v1386
        %v1388 = vpop.f32.mrf.mxu0
        %v1389 = vadd.f32 0.0, %v1388
        %1390 = vmatmul.bf16.gmra.mxu0 %v678
        %v1391 = vpop.f32.mrf.mxu0
        %v1392 = vadd.f32 0.0, %v1391
        %v1393 = vpop.f32.mrf.mxu0
        %v1394 = vadd.f32 0.0, %v1393
        %1395 = vmatmul.bf16.gmra.mxu0 %v681
        %v1396 = vpop.f32.mrf.mxu0
        %v1397 = vadd.f32 0.0, %v1396
        %v1398 = vpop.f32.mrf.mxu0
        %v1399 = vadd.f32 0.0, %v1398
        %1400 = vmatmul.bf16.gmra.mxu0 %v684
        %v1401 = vpop.f32.mrf.mxu0
        %v1402 = vadd.f32 0.0, %v1401
        %v1403 = vpop.f32.mrf.mxu0
        %v1404 = vadd.f32 0.0, %v1403
        %1405 = vmatmul.bf16.gmra.mxu0 %v687
        %v1406 = vpop.f32.mrf.mxu0
        %v1407 = vadd.f32 0.0, %v1406
        %v1408 = vpop.f32.mrf.mxu0
        %v1409 = vadd.f32 0.0, %v1408
        %1410 = vdwg.mxu0
        %v1427 = vunpack.c.l.b16 %v1322
        %v1428 = vunpack.c.l.b16 %v1323
        %v1429 = vunpack.c.l.b16 %v1324
        %v1430 = vunpack.c.l.b16 %v1325
        %v1431 = vunpack.c.l.b16 %v1326
        %v1432 = vunpack.c.l.b16 %v1327
        %v1433 = vunpack.c.l.b16 %v1328
        %v1434 = vunpack.c.l.b16 %v1329
        %v1435 = vunpack.c.l.b16 %v1330
        %v1436 = vunpack.c.l.b16 %v1331
        %v1437 = vunpack.c.l.b16 %v1332
        %v1438 = vunpack.c.l.b16 %v1333
        %v1439 = vunpack.c.l.b16 %v1334
        %v1440 = vunpack.c.l.b16 %v1335
        %v1441 = vunpack.c.l.b16 %v1336
        %v1442 = vunpack.c.l.b16 %v1337
        %v1443 = vpack.c.b16 %v1428, %v1427
        %v1444 = vpack.c.b16 %v1430, %v1429
        %v1445 = vpack.c.b16 %v1432, %v1431
        %v1446 = vpack.c.b16 %v1434, %v1433
        %v1447 = vpack.c.b16 %v1436, %v1435
        %v1448 = vpack.c.b16 %v1438, %v1437
        %v1449 = vpack.c.b16 %v1440, %v1439
        %v1450 = vpack.c.b16 %v1442, %v1441
        %1459 = vmatpush.bf16.msra.mxu0 %v1450
        %1460 = vmatpush.bf16.msra.mxu0 %v1449
        %1461 = vmatpush.bf16.msra.mxu0 %v1448
        %1462 = vmatpush.bf16.msra.mxu0 %v1447
        %1463 = vmatpush.bf16.msra.mxu0 %v1446
        %1464 = vmatpush.bf16.msra.mxu0 %v1445
        %1465 = vmatpush.bf16.msra.mxu0 %v1444
        %1466 = vmatpush.bf16.msra.mxu0 %v1443
        %1467 = vmatmul.bf16.gmra.mxu0 %v1313
        %v1468 = vpop.f32.mrf.mxu0
        %v1469 = vadd.f32 %v1372, %v1468
        %v1470 = vpop.f32.mrf.mxu0
        %v1471 = vadd.f32 %v1374, %v1470
        %1472 = vmatmul.bf16.gmra.mxu0 %v1314
        %v1473 = vpop.f32.mrf.mxu0
        %v1474 = vadd.f32 %v1377, %v1473
        %v1475 = vpop.f32.mrf.mxu0
        %v1476 = vadd.f32 %v1379, %v1475
        %1477 = vmatmul.bf16.gmra.mxu0 %v1315
        %v1478 = vpop.f32.mrf.mxu0
        %v1479 = vadd.f32 %v1382, %v1478
        %v1480 = vpop.f32.mrf.mxu0
        %v1481 = vadd.f32 %v1384, %v1480
        %1482 = vmatmul.bf16.gmra.mxu0 %v1316
        %v1483 = vpop.f32.mrf.mxu0
        %v1484 = vadd.f32 %v1387, %v1483
        %v1485 = vpop.f32.mrf.mxu0
        %v1486 = vadd.f32 %v1389, %v1485
        %1487 = vmatmul.bf16.gmra.mxu0 %v1317
        %v1488 = vpop.f32.mrf.mxu0
        %v1489 = vadd.f32 %v1392, %v1488
        %v1490 = vpop.f32.mrf.mxu0
        %v1491 = vadd.f32 %v1394, %v1490
        %1492 = vmatmul.bf16.gmra.mxu0 %v1318
        %v1493 = vpop.f32.mrf.mxu0
        %v1494 = vadd.f32 %v1397, %v1493
        %v1495 = vpop.f32.mrf.mxu0
        %v1496 = vadd.f32 %v1399, %v1495
        %1497 = vmatmul.bf16.gmra.mxu0 %v1319
        %v1498 = vpop.f32.mrf.mxu0
        %v1499 = vadd.f32 %v1402, %v1498
        %v1500 = vpop.f32.mrf.mxu0
        %v1501 = vadd.f32 %v1404, %v1500
        %1502 = vmatmul.bf16.gmra.mxu0 %v1320
        %v1503 = vpop.f32.mrf.mxu0
        %v1504 = vadd.f32 %v1407, %v1503
        %v1505 = vpop.f32.mrf.mxu0
        %v1506 = vadd.f32 %v1409, %v1505
        %1507 = vdwg.mxu0
        %v1508 = vld [vmem:[%s5 + $0x5] sm:$0x1]
        %v1509 = vperm.slane %v1508, 0
        %v1510 = vadd.f32 %v1469, %v1509
        %v1511 = vadd.f32 %v1471, %v1509
        %v1512 = vadd.f32 %v1474, %v1509
        %v1513 = vadd.f32 %v1476, %v1509
        %v1514 = vadd.f32 %v1479, %v1509
        %v1515 = vadd.f32 %v1481, %v1509
        %v1516 = vadd.f32 %v1484, %v1509
        %v1517 = vadd.f32 %v1486, %v1509
        %v1518 = vadd.f32 %v1489, %v1509
        %v1519 = vadd.f32 %v1491, %v1509
        %v1520 = vadd.f32 %v1494, %v1509
        %v1521 = vadd.f32 %v1496, %v1509
        %v1522 = vadd.f32 %v1499, %v1509
        %v1523 = vadd.f32 %v1501, %v1509
        %v1524 = vadd.f32 %v1504, %v1509
        %v1525 = vadd.f32 %v1506, %v1509
        %v1526 = vmax.f32 %v1510, 0.0
        %v1527 = vmax.f32 %v1511, 0.0
        %v1528 = vmax.f32 %v1512, 0.0
        %v1529 = vmax.f32 %v1513, 0.0
        %v1530 = vmax.f32 %v1514, 0.0
        %v1531 = vmax.f32 %v1515, 0.0
        %v1532 = vmax.f32 %v1516, 0.0
        %v1533 = vmax.f32 %v1517, 0.0
        %v1534 = vmax.f32 %v1518, 0.0
        %v1535 = vmax.f32 %v1519, 0.0
        %v1536 = vmax.f32 %v1520, 0.0
        %v1537 = vmax.f32 %v1521, 0.0
        %v1538 = vmax.f32 %v1522, 0.0
        %v1539 = vmax.f32 %v1523, 0.0
        %v1540 = vmax.f32 %v1524, 0.0
        %v1541 = vmax.f32 %v1525, 0.0
        %v1542 = vpack.c.bf16 %v1527, %v1526
        %v1543 = vpack.c.bf16 %v1529, %v1528
        %v1544 = vpack.c.bf16 %v1531, %v1530
        %v1545 = vpack.c.bf16 %v1533, %v1532
        %v1546 = vpack.c.bf16 %v1535, %v1534
        %v1547 = vpack.c.bf16 %v1537, %v1536
        %v1548 = vpack.c.bf16 %v1539, %v1538
        %v1549 = vpack.c.bf16 %v1541, %v1540
        %s1550 = scalar_lea.vmem %s3, 320
        %v1551 = vld [vmem:[%s1550] sm:$0xf]
        %v1552 = vld [vmem:[%s1550 + $0x4] sm:$0xf]
        %v1553 = vld [vmem:[%s1550 + $0x8] sm:$0xf]
        %v1554 = vld [vmem:[%s1550 + $0xc] sm:$0xf]
        %v1555 = vld [vmem:[%s1550 + $0x10] sm:$0xf]
        %v1556 = vld [vmem:[%s1550 + $0x14] sm:$0xf]
        %v1557 = vld [vmem:[%s1550 + $0x18] sm:$0xf]
        %v1558 = vld [vmem:[%s1550 + $0x1c] sm:$0xf]
        %v1559 = vld [vmem:[%s1550 + $0x20] sm:$0xf]
        %v1560 = vld [vmem:[%s1550 + $0x24] sm:$0xf]
        %v1561 = vld [vmem:[%s1550 + $0x28] sm:$0xf]
        %v1562 = vld [vmem:[%s1550 + $0x2c] sm:$0xf]
        %v1563 = vld [vmem:[%s1550 + $0x30] sm:$0xf]
        %v1564 = vld [vmem:[%s1550 + $0x34] sm:$0xf]
        %v1565 = vld [vmem:[%s1550 + $0x38] sm:$0xf]
        %v1566 = vld [vmem:[%s1550 + $0x3c] sm:$0xf]
        %v1567 = vld [vmem:[%s5 + $0x6] sm:$0x1]
        %v1568 = vperm.slane %v1567, 0
        %v1585 = vunpack.c.l.b16 %v1551
        %v1586 = vunpack.c.l.b16 %v1552
        %v1587 = vunpack.c.l.b16 %v1553
        %v1588 = vunpack.c.l.b16 %v1554
        %v1589 = vunpack.c.l.b16 %v1555
        %v1590 = vunpack.c.l.b16 %v1556
        %v1591 = vunpack.c.l.b16 %v1557
        %v1592 = vunpack.c.l.b16 %v1558
        %v1593 = vunpack.c.l.b16 %v1559
        %v1594 = vunpack.c.l.b16 %v1560
        %v1595 = vunpack.c.l.b16 %v1561
        %v1596 = vunpack.c.l.b16 %v1562
        %v1597 = vunpack.c.l.b16 %v1563
        %v1598 = vunpack.c.l.b16 %v1564
        %v1599 = vunpack.c.l.b16 %v1565
        %v1600 = vunpack.c.l.b16 %v1566
        %v1601 = vpack.c.b16 %v1586, %v1585
        %v1602 = vpack.c.b16 %v1588, %v1587
        %v1603 = vpack.c.b16 %v1590, %v1589
        %v1604 = vpack.c.b16 %v1592, %v1591
        %v1605 = vpack.c.b16 %v1594, %v1593
        %v1606 = vpack.c.b16 %v1596, %v1595
        %v1607 = vpack.c.b16 %v1598, %v1597
        %v1608 = vpack.c.b16 %v1600, %v1599
        %1617 = vmatpush.bf16.msra.mxu0 %v1608
        %1618 = vmatpush.bf16.msra.mxu0 %v1607
        %1619 = vmatpush.bf16.msra.mxu0 %v1606
        %1620 = vmatpush.bf16.msra.mxu0 %v1605
        %1621 = vmatpush.bf16.msra.mxu0 %v1604
        %1622 = vmatpush.bf16.msra.mxu0 %v1603
        %1623 = vmatpush.bf16.msra.mxu0 %v1602
        %1624 = vmatpush.bf16.msra.mxu0 %v1601
        %1625 = vmatmul.bf16.gmra.mxu0 %v1542
        %v1626 = vpop.f32.mrf.mxu0
        %v1627 = vadd.f32 %v1568, %v1626
        %v1628 = vpop.f32.mrf.mxu0
        %v1629 = vadd.f32 %v1568, %v1628
        %1630 = vmatmul.bf16.gmra.mxu0 %v1543
        %v1631 = vpop.f32.mrf.mxu0
        %v1632 = vadd.f32 %v1568, %v1631
        %v1633 = vpop.f32.mrf.mxu0
        %v1634 = vadd.f32 %v1568, %v1633
        %1635 = vmatmul.bf16.gmra.mxu0 %v1544
        %v1636 = vpop.f32.mrf.mxu0
        %v1637 = vadd.f32 %v1568, %v1636
        %v1638 = vpop.f32.mrf.mxu0
        %v1639 = vadd.f32 %v1568, %v1638
        %1640 = vmatmul.bf16.gmra.mxu0 %v1545
        %v1641 = vpop.f32.mrf.mxu0
        %v1642 = vadd.f32 %v1568, %v1641
        %v1643 = vpop.f32.mrf.mxu0
        %v1644 = vadd.f32 %v1568, %v1643
        %1645 = vmatmul.bf16.gmra.mxu0 %v1546
        %v1646 = vpop.f32.mrf.mxu0
        %v1647 = vadd.f32 %v1568, %v1646
        %v1648 = vpop.f32.mrf.mxu0
        %v1649 = vadd.f32 %v1568, %v1648
        %1650 = vmatmul.bf16.gmra.mxu0 %v1547
        %v1651 = vpop.f32.mrf.mxu0
        %v1652 = vadd.f32 %v1568, %v1651
        %v1653 = vpop.f32.mrf.mxu0
        %v1654 = vadd.f32 %v1568, %v1653
        %1655 = vmatmul.bf16.gmra.mxu0 %v1548
        %v1656 = vpop.f32.mrf.mxu0
        %v1657 = vadd.f32 %v1568, %v1656
        %v1658 = vpop.f32.mrf.mxu0
        %v1659 = vadd.f32 %v1568, %v1658
        %1660 = vmatmul.bf16.gmra.mxu0 %v1549
        %v1661 = vpop.f32.mrf.mxu0
        %v1662 = vadd.f32 %v1568, %v1661
        %v1663 = vpop.f32.mrf.mxu0
        %v1664 = vadd.f32 %v1568, %v1663
        %1665 = vdwg.mxu0
        %v1666 = vmax.f32 %v1627, 0.0
        %v1667 = vmax.f32 %v1629, 0.0
        %v1668 = vmax.f32 %v1632, 0.0
        %v1669 = vmax.f32 %v1634, 0.0
        %v1670 = vmax.f32 %v1637, 0.0
        %v1671 = vmax.f32 %v1639, 0.0
        %v1672 = vmax.f32 %v1642, 0.0
        %v1673 = vmax.f32 %v1644, 0.0
        %v1674 = vmax.f32 %v1647, 0.0
        %v1675 = vmax.f32 %v1649, 0.0
        %v1676 = vmax.f32 %v1652, 0.0
        %v1677 = vmax.f32 %v1654, 0.0
        %v1678 = vmax.f32 %v1657, 0.0
        %v1679 = vmax.f32 %v1659, 0.0
        %v1680 = vmax.f32 %v1662, 0.0
        %v1681 = vmax.f32 %v1664, 0.0
        %v1682 = vpack.c.bf16 %v1667, %v1666
        %v1683 = vpack.c.bf16 %v1669, %v1668
        %v1684 = vpack.c.bf16 %v1671, %v1670
        %v1685 = vpack.c.bf16 %v1673, %v1672
        %v1686 = vpack.c.bf16 %v1675, %v1674
        %v1687 = vpack.c.bf16 %v1677, %v1676
        %v1688 = vpack.c.bf16 %v1679, %v1678
        %v1689 = vpack.c.bf16 %v1681, %v1680
        %s1690 = scalar_lea.vmem %s3, 384
        %v1691 = vld [vmem:[%s1690] sm:$0xf]
        %v1692 = vld [vmem:[%s1690 + $0x4] sm:$0xf]
        %v1693 = vld [vmem:[%s1690 + $0x8] sm:$0xf]
        %v1694 = vld [vmem:[%s1690 + $0xc] sm:$0xf]
        %v1695 = vld [vmem:[%s1690 + $0x10] sm:$0xf]
        %v1696 = vld [vmem:[%s1690 + $0x14] sm:$0xf]
        %v1697 = vld [vmem:[%s1690 + $0x18] sm:$0xf]
        %v1698 = vld [vmem:[%s1690 + $0x1c] sm:$0xf]
        %v1699 = vld [vmem:[%s1690 + $0x20] sm:$0xf]
        %v1700 = vld [vmem:[%s1690 + $0x24] sm:$0xf]
        %v1701 = vld [vmem:[%s1690 + $0x28] sm:$0xf]
        %v1702 = vld [vmem:[%s1690 + $0x2c] sm:$0xf]
        %v1703 = vld [vmem:[%s1690 + $0x30] sm:$0xf]
        %v1704 = vld [vmem:[%s1690 + $0x34] sm:$0xf]
        %v1705 = vld [vmem:[%s1690 + $0x38] sm:$0xf]
        %v1706 = vld [vmem:[%s1690 + $0x3c] sm:$0xf]
        %v1707 = vld [vmem:[%s5 + $0x7] sm:$0x1]
        %v1708 = vperm.slane %v1707, 0
        %v1725 = vunpack.c.l.b16 %v1691
        %v1726 = vunpack.c.l.b16 %v1692
        %v1727 = vunpack.c.l.b16 %v1693
        %v1728 = vunpack.c.l.b16 %v1694
        %v1729 = vunpack.c.l.b16 %v1695
        %v1730 = vunpack.c.l.b16 %v1696
        %v1731 = vunpack.c.l.b16 %v1697
        %v1732 = vunpack.c.l.b16 %v1698
        %v1733 = vunpack.c.l.b16 %v1699
        %v1734 = vunpack.c.l.b16 %v1700
        %v1735 = vunpack.c.l.b16 %v1701
        %v1736 = vunpack.c.l.b16 %v1702
        %v1737 = vunpack.c.l.b16 %v1703
        %v1738 = vunpack.c.l.b16 %v1704
        %v1739 = vunpack.c.l.b16 %v1705
        %v1740 = vunpack.c.l.b16 %v1706
        %v1741 = vpack.c.b16 %v1726, %v1725
        %v1742 = vpack.c.b16 %v1728, %v1727
        %v1743 = vpack.c.b16 %v1730, %v1729
        %v1744 = vpack.c.b16 %v1732, %v1731
        %v1745 = vpack.c.b16 %v1734, %v1733
        %v1746 = vpack.c.b16 %v1736, %v1735
        %v1747 = vpack.c.b16 %v1738, %v1737
        %v1748 = vpack.c.b16 %v1740, %v1739
        %1757 = vmatpush.bf16.msra.mxu0 %v1748
        %1758 = vmatpush.bf16.msra.mxu0 %v1747
        %1759 = vmatpush.bf16.msra.mxu0 %v1746
        %1760 = vmatpush.bf16.msra.mxu0 %v1745
        %1761 = vmatpush.bf16.msra.mxu0 %v1744
        %1762 = vmatpush.bf16.msra.mxu0 %v1743
        %1763 = vmatpush.bf16.msra.mxu0 %v1742
        %1764 = vmatpush.bf16.msra.mxu0 %v1741
        %1765 = vmatmul.bf16.gmra.mxu0 %v1682
        %v1766 = vpop.f32.mrf.mxu0
        %v1767 = vadd.f32 %v1708, %v1766
        %v1768 = vpop.f32.mrf.mxu0
        %v1769 = vadd.f32 %v1708, %v1768
        %1770 = vmatmul.bf16.gmra.mxu0 %v1683
        %v1771 = vpop.f32.mrf.mxu0
        %v1772 = vadd.f32 %v1708, %v1771
        %v1773 = vpop.f32.mrf.mxu0
        %v1774 = vadd.f32 %v1708, %v1773
        %1775 = vmatmul.bf16.gmra.mxu0 %v1684
        %v1776 = vpop.f32.mrf.mxu0
        %v1777 = vadd.f32 %v1708, %v1776
        %v1778 = vpop.f32.mrf.mxu0
        %v1779 = vadd.f32 %v1708, %v1778
        %1780 = vmatmul.bf16.gmra.mxu0 %v1685
        %v1781 = vpop.f32.mrf.mxu0
        %v1782 = vadd.f32 %v1708, %v1781
        %v1783 = vpop.f32.mrf.mxu0
        %v1784 = vadd.f32 %v1708, %v1783
        %1785 = vmatmul.bf16.gmra.mxu0 %v1686
        %v1786 = vpop.f32.mrf.mxu0
        %v1787 = vadd.f32 %v1708, %v1786
        %v1788 = vpop.f32.mrf.mxu0
        %v1789 = vadd.f32 %v1708, %v1788
        %1790 = vmatmul.bf16.gmra.mxu0 %v1687
        %v1791 = vpop.f32.mrf.mxu0
        %v1792 = vadd.f32 %v1708, %v1791
        %v1793 = vpop.f32.mrf.mxu0
        %v1794 = vadd.f32 %v1708, %v1793
        %1795 = vmatmul.bf16.gmra.mxu0 %v1688
        %v1796 = vpop.f32.mrf.mxu0
        %v1797 = vadd.f32 %v1708, %v1796
        %v1798 = vpop.f32.mrf.mxu0
        %v1799 = vadd.f32 %v1708, %v1798
        %1800 = vmatmul.bf16.gmra.mxu0 %v1689
        %v1801 = vpop.f32.mrf.mxu0
        %v1802 = vadd.f32 %v1708, %v1801
        %v1803 = vpop.f32.mrf.mxu0
        %v1804 = vadd.f32 %v1708, %v1803
        %1805 = vdwg.mxu0
        %v1806 = vmax.f32 %v1767, 0.0
        %v1807 = vmax.f32 %v1769, 0.0
        %v1808 = vmax.f32 %v1772, 0.0
        %v1809 = vmax.f32 %v1774, 0.0
        %v1810 = vmax.f32 %v1777, 0.0
        %v1811 = vmax.f32 %v1779, 0.0
        %v1812 = vmax.f32 %v1782, 0.0
        %v1813 = vmax.f32 %v1784, 0.0
        %v1814 = vmax.f32 %v1787, 0.0
        %v1815 = vmax.f32 %v1789, 0.0
        %v1816 = vmax.f32 %v1792, 0.0
        %v1817 = vmax.f32 %v1794, 0.0
        %v1818 = vmax.f32 %v1797, 0.0
        %v1819 = vmax.f32 %v1799, 0.0
        %v1820 = vmax.f32 %v1802, 0.0
        %v1821 = vmax.f32 %v1804, 0.0
        %v1822 = vpack.c.bf16 %v1807, %v1806
        %v1823 = vpack.c.bf16 %v1809, %v1808
        %v1824 = vpack.c.bf16 %v1811, %v1810
        %v1825 = vpack.c.bf16 %v1813, %v1812
        %v1826 = vpack.c.bf16 %v1815, %v1814
        %v1827 = vpack.c.bf16 %v1817, %v1816
        %v1828 = vpack.c.bf16 %v1819, %v1818
        %v1829 = vpack.c.bf16 %v1821, %v1820
        %v1830 = vld [vmem:[%s6] sm:$0xff]
        %v1831 = vld [vmem:[%s6 + $0x8] sm:$0xff]
        %v1832 = vld [vmem:[%s6 + $0x10] sm:$0xff]
        %v1833 = vld [vmem:[%s6 + $0x18] sm:$0xff]
        %v1834 = vld [vmem:[%s6 + $0x20] sm:$0xff]
        %v1835 = vld [vmem:[%s6 + $0x28] sm:$0xff]
        %v1836 = vld [vmem:[%s6 + $0x30] sm:$0xff]
        %v1837 = vld [vmem:[%s6 + $0x38] sm:$0xff]
        %v1838 = vld [vmem:[%s6 + $0x40] sm:$0xff]
        %v1839 = vld [vmem:[%s6 + $0x48] sm:$0xff]
        %v1840 = vld [vmem:[%s6 + $0x50] sm:$0xff]
        %v1841 = vld [vmem:[%s6 + $0x58] sm:$0xff]
        %v1842 = vld [vmem:[%s6 + $0x60] sm:$0xff]
        %v1843 = vld [vmem:[%s6 + $0x68] sm:$0xff]
        %v1844 = vld [vmem:[%s6 + $0x70] sm:$0xff]
        %v1845 = vld [vmem:[%s6 + $0x78] sm:$0xff]
        %v1846 = vld [vmem:[#allocation2] sm:$0x3]
        %v1848 = vperm.slane %v1846, 0
        %v1849 = vperm.slane %v1846, 1
        %v1868 = vunpack.c.l.b16 %v1830
        %v1869 = vunpack.c.h.b16 %v1830
        %v1870 = vunpack.c.l.b16 %v1831
        %v1871 = vunpack.c.h.b16 %v1831
        %v1872 = vunpack.c.l.b16 %v1832
        %v1873 = vunpack.c.h.b16 %v1832
        %v1874 = vunpack.c.l.b16 %v1833
        %v1875 = vunpack.c.h.b16 %v1833
        %v1876 = vunpack.c.l.b16 %v1834
        %v1877 = vunpack.c.h.b16 %v1834
        %v1878 = vunpack.c.l.b16 %v1835
        %v1879 = vunpack.c.h.b16 %v1835
        %v1880 = vunpack.c.l.b16 %v1836
        %v1881 = vunpack.c.h.b16 %v1836
        %v1882 = vunpack.c.l.b16 %v1837
        %v1883 = vunpack.c.h.b16 %v1837
        %v1884 = vunpack.c.l.b16 %v1838
        %v1885 = vunpack.c.h.b16 %v1838
        %v1886 = vunpack.c.l.b16 %v1839
        %v1887 = vunpack.c.h.b16 %v1839
        %v1888 = vunpack.c.l.b16 %v1840
        %v1889 = vunpack.c.h.b16 %v1840
        %v1890 = vunpack.c.l.b16 %v1841
        %v1891 = vunpack.c.h.b16 %v1841
        %v1892 = vunpack.c.l.b16 %v1842
        %v1893 = vunpack.c.h.b16 %v1842
        %v1894 = vunpack.c.l.b16 %v1843
        %v1895 = vunpack.c.h.b16 %v1843
        %v1896 = vunpack.c.l.b16 %v1844
        %v1897 = vunpack.c.h.b16 %v1844
        %v1898 = vunpack.c.l.b16 %v1845
        %v1899 = vunpack.c.h.b16 %v1845
        %v1900 = vpack.c.b16 %v1870, %v1868
        %v1901 = vpack.c.b16 %v1871, %v1869
        %v1902 = vpack.c.b16 %v1874, %v1872
        %v1903 = vpack.c.b16 %v1875, %v1873
        %v1904 = vpack.c.b16 %v1878, %v1876
        %v1905 = vpack.c.b16 %v1879, %v1877
        %v1906 = vpack.c.b16 %v1882, %v1880
        %v1907 = vpack.c.b16 %v1883, %v1881
        %v1908 = vpack.c.b16 %v1886, %v1884
        %v1909 = vpack.c.b16 %v1887, %v1885
        %v1910 = vpack.c.b16 %v1890, %v1888
        %v1911 = vpack.c.b16 %v1891, %v1889
        %v1912 = vpack.c.b16 %v1894, %v1892
        %v1913 = vpack.c.b16 %v1895, %v1893
        %v1914 = vpack.c.b16 %v1898, %v1896
        %v1915 = vpack.c.b16 %v1899, %v1897
        %1932 = vmatpush.bf16.msra.mxu0 %v1914
        %1933 = vmatpush.bf16.msra.mxu0 %v1912
        %1934 = vmatpush.bf16.msra.mxu0 %v1910
        %1935 = vmatpush.bf16.msra.mxu0 %v1908
        %1936 = vmatpush.bf16.msra.mxu0 %v1906
        %1937 = vmatpush.bf16.msra.mxu0 %v1904
        %1938 = vmatpush.bf16.msra.mxu0 %v1902
        %1939 = vmatpush.bf16.msra.mxu0 %v1900
        %1940 = vmatmul.bf16.gmra.mxu0 %v1822
        %v1941 = vpop.f32.mrf.mxu0
        %v1942 = vadd.f32 %v1848, %v1941
        %v1943 = vpop.f32.mrf.mxu0
        %v1944 = vadd.f32 %v1848, %v1943
        %1945 = vmatmul.bf16.gmra.mxu0 %v1823
        %v1946 = vpop.f32.mrf.mxu0
        %v1947 = vadd.f32 %v1848, %v1946
        %v1948 = vpop.f32.mrf.mxu0
        %v1949 = vadd.f32 %v1848, %v1948
        %1950 = vmatmul.bf16.gmra.mxu0 %v1824
        %v1951 = vpop.f32.mrf.mxu0
        %v1952 = vadd.f32 %v1848, %v1951
        %v1953 = vpop.f32.mrf.mxu0
        %v1954 = vadd.f32 %v1848, %v1953
        %1955 = vmatmul.bf16.gmra.mxu0 %v1825
        %v1956 = vpop.f32.mrf.mxu0
        %v1957 = vadd.f32 %v1848, %v1956
        %v1958 = vpop.f32.mrf.mxu0
        %v1959 = vadd.f32 %v1848, %v1958
        %1960 = vmatmul.bf16.gmra.mxu0 %v1826
        %v1961 = vpop.f32.mrf.mxu0
        %v1962 = vadd.f32 %v1848, %v1961
        %v1963 = vpop.f32.mrf.mxu0
        %v1964 = vadd.f32 %v1848, %v1963
        %1965 = vmatmul.bf16.gmra.mxu0 %v1827
        %v1966 = vpop.f32.mrf.mxu0
        %v1967 = vadd.f32 %v1848, %v1966
        %v1968 = vpop.f32.mrf.mxu0
        %v1969 = vadd.f32 %v1848, %v1968
        %1970 = vmatmul.bf16.gmra.mxu0 %v1828
        %v1971 = vpop.f32.mrf.mxu0
        %v1972 = vadd.f32 %v1848, %v1971
        %v1973 = vpop.f32.mrf.mxu0
        %v1974 = vadd.f32 %v1848, %v1973
        %1975 = vmatmul.bf16.gmra.mxu0 %v1829
        %v1976 = vpop.f32.mrf.mxu0
        %v1977 = vadd.f32 %v1848, %v1976
        %v1978 = vpop.f32.mrf.mxu0
        %v1979 = vadd.f32 %v1848, %v1978
        %1980 = vdwg.mxu0
        %1981 = vmatpush.bf16.msra.mxu0 %v1915
        %1982 = vmatpush.bf16.msra.mxu0 %v1913
        %1983 = vmatpush.bf16.msra.mxu0 %v1911
        %1984 = vmatpush.bf16.msra.mxu0 %v1909
        %1985 = vmatpush.bf16.msra.mxu0 %v1907
        %1986 = vmatpush.bf16.msra.mxu0 %v1905
        %1987 = vmatpush.bf16.msra.mxu0 %v1903
        %1988 = vmatpush.bf16.msra.mxu0 %v1901
        %1989 = vmatmul.bf16.gmra.mxu0 %v1822
        %v1990 = vpop.f32.mrf.mxu0
        %v1991 = vadd.f32 %v1849, %v1990
        %v1992 = vpop.f32.mrf.mxu0
        %v1993 = vadd.f32 %v1849, %v1992
        %1994 = vmatmul.bf16.gmra.mxu0 %v1823
        %v1995 = vpop.f32.mrf.mxu0
        %v1996 = vadd.f32 %v1849, %v1995
        %v1997 = vpop.f32.mrf.mxu0
        %v1998 = vadd.f32 %v1849, %v1997
        %1999 = vmatmul.bf16.gmra.mxu0 %v1824
        %v2000 = vpop.f32.mrf.mxu0
        %v2001 = vadd.f32 %v1849, %v2000
        %v2002 = vpop.f32.mrf.mxu0
        %v2003 = vadd.f32 %v1849, %v2002
        %2004 = vmatmul.bf16.gmra.mxu0 %v1825
        %v2005 = vpop.f32.mrf.mxu0
        %v2006 = vadd.f32 %v1849, %v2005
        %v2007 = vpop.f32.mrf.mxu0
        %v2008 = vadd.f32 %v1849, %v2007
        %2009 = vmatmul.bf16.gmra.mxu0 %v1826
        %v2010 = vpop.f32.mrf.mxu0
        %v2011 = vadd.f32 %v1849, %v2010
        %v2012 = vpop.f32.mrf.mxu0
        %v2013 = vadd.f32 %v1849, %v2012
        %2014 = vmatmul.bf16.gmra.mxu0 %v1827
        %v2015 = vpop.f32.mrf.mxu0
        %v2016 = vadd.f32 %v1849, %v2015
        %v2017 = vpop.f32.mrf.mxu0
        %v2018 = vadd.f32 %v1849, %v2017
        %2019 = vmatmul.bf16.gmra.mxu0 %v1828
        %v2020 = vpop.f32.mrf.mxu0
        %v2021 = vadd.f32 %v1849, %v2020
        %v2022 = vpop.f32.mrf.mxu0
        %v2023 = vadd.f32 %v1849, %v2022
        %2024 = vmatmul.bf16.gmra.mxu0 %v1829
        %v2025 = vpop.f32.mrf.mxu0
        %v2026 = vadd.f32 %v1849, %v2025
        %v2027 = vpop.f32.mrf.mxu0
        %v2028 = vadd.f32 %v1849, %v2027
        %2029 = vdwg.mxu0
        %v2030 = vpack.c.bf16 %v1944, %v1942
        %v2031 = vpack.c.bf16 %v1949, %v1947
        %v2032 = vpack.c.bf16 %v1954, %v1952
        %v2033 = vpack.c.bf16 %v1959, %v1957
        %v2034 = vpack.c.bf16 %v1964, %v1962
        %v2035 = vpack.c.bf16 %v1969, %v1967
        %v2036 = vpack.c.bf16 %v1974, %v1972
        %v2037 = vpack.c.bf16 %v1979, %v1977
        %v2038 = vld [vmem:[%s8] sm:$0xf]
        %v2039 = vld [vmem:[%s8 + $0x4] sm:$0xf]
        %v2040 = vld [vmem:[%s8 + $0x8] sm:$0xf]
        %v2041 = vld [vmem:[%s8 + $0xc] sm:$0xf]
        %v2042 = vld [vmem:[%s8 + $0x10] sm:$0xf]
        %v2043 = vld [vmem:[%s8 + $0x14] sm:$0xf]
        %v2044 = vld [vmem:[%s8 + $0x18] sm:$0xf]
        %v2045 = vld [vmem:[%s8 + $0x1c] sm:$0xf]
        %v2046 = vld [vmem:[%s8 + $0x20] sm:$0xf]
        %v2047 = vld [vmem:[%s8 + $0x24] sm:$0xf]
        %v2048 = vld [vmem:[%s8 + $0x28] sm:$0xf]
        %v2049 = vld [vmem:[%s8 + $0x2c] sm:$0xf]
        %v2050 = vld [vmem:[%s8 + $0x30] sm:$0xf]
        %v2051 = vld [vmem:[%s8 + $0x34] sm:$0xf]
        %v2052 = vld [vmem:[%s8 + $0x38] sm:$0xf]
        %v2053 = vld [vmem:[%s8 + $0x3c] sm:$0xf]
        %v2054 = vld [vmem:[#allocation4] sm:$0xf]
        %v2055 = vld [vmem:[#allocation4 + $0x4] sm:$0xf]
        %v2056 = vld [vmem:[#allocation4 + $0x8] sm:$0xf]
        %v2073 = vunpack.c.l.b16 %v582
        %v2074 = vunpack.c.l.b16 %v583
        %v2075 = vunpack.c.l.b16 %v584
        %v2076 = vunpack.c.l.b16 %v585
        %v2077 = vunpack.c.l.b16 %v586
        %v2078 = vunpack.c.l.b16 %v587
        %v2079 = vunpack.c.l.b16 %v588
        %v2080 = vunpack.c.l.b16 %v589
        %v2081 = vunpack.c.l.b16 %v590
        %v2082 = vunpack.c.l.b16 %v591
        %v2083 = vunpack.c.l.b16 %v592
        %v2084 = vunpack.c.l.b16 %v593
        %v2085 = vunpack.c.l.b16 %v594
        %v2086 = vunpack.c.l.b16 %v595
        %v2087 = vunpack.c.l.b16 %v596
        %v2088 = vunpack.c.l.b16 %v597
        %v2089 = vpack.c.b16 %v2074, %v2073
        %v2090 = vpack.c.b16 %v2076, %v2075
        %v2091 = vpack.c.b16 %v2078, %v2077
        %v2092 = vpack.c.b16 %v2080, %v2079
        %v2093 = vpack.c.b16 %v2082, %v2081
        %v2094 = vpack.c.b16 %v2084, %v2083
        %v2095 = vpack.c.b16 %v2086, %v2085
        %v2096 = vpack.c.b16 %v2088, %v2087
        %v2100 = vunpack.c.l.b16 %v2054
        %v2101 = vunpack.c.l.b16 %v2055
        %v2102 = vunpack.c.l.b16 %v2056
        %v2103 = vpack.c.b16 %v2101, %v2100
        %v2104 = vpack.c.b16 %v2102, %v2102
        %vm2106 = vcmask 195584
        %v2108 = vsel %vm2106, %v2089, 0
        %v2111 = vsel %vm2106, %v2090, 0
        %v2114 = vsel %vm2106, %v2091, 0
        %v2117 = vsel %vm2106, %v2092, 0
        %v2120 = vsel %vm2106, %v2093, 0
        %v2123 = vsel %vm2106, %v2094, 0
        %v2126 = vsel %vm2106, %v2095, 0
        %v2129 = vsel %vm2106, %v2096, 0
        %vm2131 = vcmask 1043456
        %v2133 = vsel %vm2131, %v2104, 0
        %2135 = vmatpush.bf16.msra.mxu0 0
        %2136 = vmatpush.bf16.msra.mxu0 0
        %2137 = vmatpush.bf16.msra.mxu0 0
        %2138 = vmatpush.bf16.msra.mxu0 0
        %2139 = vmatpush.bf16.msra.mxu0 0
        %2140 = vmatpush.bf16.msra.mxu0 0
        %2141 = vmatpush.bf16.msra.mxu0 %v2133
        %2142 = vmatpush.bf16.msra.mxu0 %v2103
        %2143 = vmatmul.bf16.gmra.mxu0 %v2108
        %v2144 = vpop.f32.mrf.mxu0
        %v2145 = vadd.f32 0.0, %v2144
        %v2146 = vpop.f32.mrf.mxu0
        %v2147 = vadd.f32 0.0, %v2146
        %2148 = vmatmul.bf16.gmra.mxu0 %v2111
        %v2149 = vpop.f32.mrf.mxu0
        %v2150 = vadd.f32 0.0, %v2149
        %v2151 = vpop.f32.mrf.mxu0
        %v2152 = vadd.f32 0.0, %v2151
        %2153 = vmatmul.bf16.gmra.mxu0 %v2114
        %v2154 = vpop.f32.mrf.mxu0
        %v2155 = vadd.f32 0.0, %v2154
        %v2156 = vpop.f32.mrf.mxu0
        %v2157 = vadd.f32 0.0, %v2156
        %2158 = vmatmul.bf16.gmra.mxu0 %v2117
        %v2159 = vpop.f32.mrf.mxu0
        %v2160 = vadd.f32 0.0, %v2159
        %v2161 = vpop.f32.mrf.mxu0
        %v2162 = vadd.f32 0.0, %v2161
        %2163 = vmatmul.bf16.gmra.mxu0 %v2120
        %v2164 = vpop.f32.mrf.mxu0
        %v2165 = vadd.f32 0.0, %v2164
        %v2166 = vpop.f32.mrf.mxu0
        %v2167 = vadd.f32 0.0, %v2166
        %2168 = vmatmul.bf16.gmra.mxu0 %v2123
        %v2169 = vpop.f32.mrf.mxu0
        %v2170 = vadd.f32 0.0, %v2169
        %v2171 = vpop.f32.mrf.mxu0
        %v2172 = vadd.f32 0.0, %v2171
        %2173 = vmatmul.bf16.gmra.mxu0 %v2126
        %v2174 = vpop.f32.mrf.mxu0
        %v2175 = vadd.f32 0.0, %v2174
        %v2176 = vpop.f32.mrf.mxu0
        %v2177 = vadd.f32 0.0, %v2176
        %2178 = vmatmul.bf16.gmra.mxu0 %v2129
        %v2179 = vpop.f32.mrf.mxu0
        %v2180 = vadd.f32 0.0, %v2179
        %v2181 = vpop.f32.mrf.mxu0
        %v2182 = vadd.f32 0.0, %v2181
        %2183 = vdwg.mxu0
        %v2200 = vunpack.c.l.b16 %v2038
        %v2201 = vunpack.c.l.b16 %v2039
        %v2202 = vunpack.c.l.b16 %v2040
        %v2203 = vunpack.c.l.b16 %v2041
        %v2204 = vunpack.c.l.b16 %v2042
        %v2205 = vunpack.c.l.b16 %v2043
        %v2206 = vunpack.c.l.b16 %v2044
        %v2207 = vunpack.c.l.b16 %v2045
        %v2208 = vunpack.c.l.b16 %v2046
        %v2209 = vunpack.c.l.b16 %v2047
        %v2210 = vunpack.c.l.b16 %v2048
        %v2211 = vunpack.c.l.b16 %v2049
        %v2212 = vunpack.c.l.b16 %v2050
        %v2213 = vunpack.c.l.b16 %v2051
        %v2214 = vunpack.c.l.b16 %v2052
        %v2215 = vunpack.c.l.b16 %v2053
        %v2216 = vpack.c.b16 %v2201, %v2200
        %v2217 = vpack.c.b16 %v2203, %v2202
        %v2218 = vpack.c.b16 %v2205, %v2204
        %v2219 = vpack.c.b16 %v2207, %v2206
        %v2220 = vpack.c.b16 %v2209, %v2208
        %v2221 = vpack.c.b16 %v2211, %v2210
        %v2222 = vpack.c.b16 %v2213, %v2212
        %v2223 = vpack.c.b16 %v2215, %v2214
        %2232 = vmatpush.bf16.msra.mxu0 %v2223
        %2233 = vmatpush.bf16.msra.mxu0 %v2222
        %2234 = vmatpush.bf16.msra.mxu0 %v2221
        %2235 = vmatpush.bf16.msra.mxu0 %v2220
        %2236 = vmatpush.bf16.msra.mxu0 %v2219
        %2237 = vmatpush.bf16.msra.mxu0 %v2218
        %2238 = vmatpush.bf16.msra.mxu0 %v2217
        %2239 = vmatpush.bf16.msra.mxu0 %v2216
        %2240 = vmatmul.bf16.gmra.mxu0 %v2030
        %v2241 = vpop.f32.mrf.mxu0
        %v2242 = vadd.f32 %v2145, %v2241
        %v2243 = vpop.f32.mrf.mxu0
        %v2244 = vadd.f32 %v2147, %v2243
        %2245 = vmatmul.bf16.gmra.mxu0 %v2031
        %v2246 = vpop.f32.mrf.mxu0
        %v2247 = vadd.f32 %v2150, %v2246
        %v2248 = vpop.f32.mrf.mxu0
        %v2249 = vadd.f32 %v2152, %v2248
        %2250 = vmatmul.bf16.gmra.mxu0 %v2032
        %v2251 = vpop.f32.mrf.mxu0
        %v2252 = vadd.f32 %v2155, %v2251
        %v2253 = vpop.f32.mrf.mxu0
        %v2254 = vadd.f32 %v2157, %v2253
        %2255 = vmatmul.bf16.gmra.mxu0 %v2033
        %v2256 = vpop.f32.mrf.mxu0
        %v2257 = vadd.f32 %v2160, %v2256
        %v2258 = vpop.f32.mrf.mxu0
        %v2259 = vadd.f32 %v2162, %v2258
        %2260 = vmatmul.bf16.gmra.mxu0 %v2034
        %v2261 = vpop.f32.mrf.mxu0
        %v2262 = vadd.f32 %v2165, %v2261
        %v2263 = vpop.f32.mrf.mxu0
        %v2264 = vadd.f32 %v2167, %v2263
        %2265 = vmatmul.bf16.gmra.mxu0 %v2035
        %v2266 = vpop.f32.mrf.mxu0
        %v2267 = vadd.f32 %v2170, %v2266
        %v2268 = vpop.f32.mrf.mxu0
        %v2269 = vadd.f32 %v2172, %v2268
        %2270 = vmatmul.bf16.gmra.mxu0 %v2036
        %v2271 = vpop.f32.mrf.mxu0
        %v2272 = vadd.f32 %v2175, %v2271
        %v2273 = vpop.f32.mrf.mxu0
        %v2274 = vadd.f32 %v2177, %v2273
        %2275 = vmatmul.bf16.gmra.mxu0 %v2037
        %v2276 = vpop.f32.mrf.mxu0
        %v2277 = vadd.f32 %v2180, %v2276
        %v2278 = vpop.f32.mrf.mxu0
        %v2279 = vadd.f32 %v2182, %v2278
        %2280 = vdwg.mxu0
        %v2281 = vld [vmem:[#allocation6] sm:$0x1]
        %v2283 = vperm.slane %v2281, 0
        %v2285 = vadd.f32 %v2242, %v2283
        %v2286 = vadd.f32 %v2244, %v2283
        %v2287 = vadd.f32 %v2247, %v2283
        %v2288 = vadd.f32 %v2249, %v2283
        %v2289 = vadd.f32 %v2252, %v2283
        %v2290 = vadd.f32 %v2254, %v2283
        %v2291 = vadd.f32 %v2257, %v2283
        %v2292 = vadd.f32 %v2259, %v2283
        %v2293 = vadd.f32 %v2262, %v2283
        %v2294 = vadd.f32 %v2264, %v2283
        %v2295 = vadd.f32 %v2267, %v2283
        %v2296 = vadd.f32 %v2269, %v2283
        %v2297 = vadd.f32 %v2272, %v2283
        %v2298 = vadd.f32 %v2274, %v2283
        %v2299 = vadd.f32 %v2277, %v2283
        %v2300 = vadd.f32 %v2279, %v2283
        %v2301 = vmax.f32 %v2285, 0.0
        %v2302 = vmax.f32 %v2286, 0.0
        %v2303 = vmax.f32 %v2287, 0.0
        %v2304 = vmax.f32 %v2288, 0.0
        %v2305 = vmax.f32 %v2289, 0.0
        %v2306 = vmax.f32 %v2290, 0.0
        %v2307 = vmax.f32 %v2291, 0.0
        %v2308 = vmax.f32 %v2292, 0.0
        %v2309 = vmax.f32 %v2293, 0.0
        %v2310 = vmax.f32 %v2294, 0.0
        %v2311 = vmax.f32 %v2295, 0.0
        %v2312 = vmax.f32 %v2296, 0.0
        %v2313 = vmax.f32 %v2297, 0.0
        %v2314 = vmax.f32 %v2298, 0.0
        %v2315 = vmax.f32 %v2299, 0.0
        %v2316 = vmax.f32 %v2300, 0.0
        %v2317 = vpack.c.bf16 %v2302, %v2301
        %v2318 = vpack.c.bf16 %v2304, %v2303
        %v2319 = vpack.c.bf16 %v2306, %v2305
        %v2320 = vpack.c.bf16 %v2308, %v2307
        %v2321 = vpack.c.bf16 %v2310, %v2309
        %v2322 = vpack.c.bf16 %v2312, %v2311
        %v2323 = vpack.c.bf16 %v2314, %v2313
        %v2324 = vpack.c.bf16 %v2316, %v2315
        %v2325 = vld [vmem:[%s11] sm:$0xf]
        %v2326 = vld [vmem:[%s11 + $0x4] sm:$0xf]
        %v2327 = vld [vmem:[%s11 + $0x8] sm:$0xf]
        %v2328 = vld [vmem:[%s11 + $0xc] sm:$0xf]
        %v2329 = vld [vmem:[%s11 + $0x10] sm:$0xf]
        %v2330 = vld [vmem:[%s11 + $0x14] sm:$0xf]
        %v2331 = vld [vmem:[%s11 + $0x18] sm:$0xf]
        %v2332 = vld [vmem:[%s11 + $0x1c] sm:$0xf]
        %v2333 = vld [vmem:[#allocation7] sm:$0x1]
        %v2335 = vperm.slane %v2333, 0
        %v2345 = vunpack.c.l.b16 %v2325
        %v2346 = vunpack.c.l.b16 %v2326
        %v2347 = vunpack.c.l.b16 %v2327
        %v2348 = vunpack.c.l.b16 %v2328
        %v2349 = vunpack.c.l.b16 %v2329
        %v2350 = vunpack.c.l.b16 %v2330
        %v2351 = vunpack.c.l.b16 %v2331
        %v2352 = vunpack.c.l.b16 %v2332
        %v2353 = vpack.c.b16 %v2346, %v2345
        %v2354 = vpack.c.b16 %v2348, %v2347
        %v2355 = vpack.c.b16 %v2350, %v2349
        %v2356 = vpack.c.b16 %v2352, %v2351
        %vm2361 = vcmask 523264
        %v2363 = vsel %vm2361, %v2317, 0
        %v2366 = vsel %vm2361, %v2318, 0
        %v2369 = vsel %vm2361, %v2319, 0
        %v2372 = vsel %vm2361, %v2320, 0
        %v2375 = vsel %vm2361, %v2321, 0
        %v2378 = vsel %vm2361, %v2322, 0
        %v2381 = vsel %vm2361, %v2323, 0
        %v2384 = vsel %vm2361, %v2324, 0
        %2386 = vmatpush.bf16.msra.mxu0 0
        %2387 = vmatpush.bf16.msra.mxu0 0
        %2388 = vmatpush.bf16.msra.mxu0 0
        %2389 = vmatpush.bf16.msra.mxu0 0
        %2390 = vmatpush.bf16.msra.mxu0 %v2356
        %2391 = vmatpush.bf16.msra.mxu0 %v2355
        %2392 = vmatpush.bf16.msra.mxu0 %v2354
        %2393 = vmatpush.bf16.msra.mxu0 %v2353
        %2394 = vmatmul.bf16.gmra.mxu0 %v2363
        %v2395 = vpop.f32.mrf.mxu0
        %v2396 = vadd.f32 %v2335, %v2395
        %v2397 = vpop.f32.mrf.mxu0
        %v2398 = vadd.f32 %v2335, %v2397
        %2399 = vmatmul.bf16.gmra.mxu0 %v2366
        %v2400 = vpop.f32.mrf.mxu0
        %v2401 = vadd.f32 %v2335, %v2400
        %v2402 = vpop.f32.mrf.mxu0
        %v2403 = vadd.f32 %v2335, %v2402
        %2404 = vmatmul.bf16.gmra.mxu0 %v2369
        %v2405 = vpop.f32.mrf.mxu0
        %v2406 = vadd.f32 %v2335, %v2405
        %v2407 = vpop.f32.mrf.mxu0
        %v2408 = vadd.f32 %v2335, %v2407
        %2409 = vmatmul.bf16.gmra.mxu0 %v2372
        %v2410 = vpop.f32.mrf.mxu0
        %v2411 = vadd.f32 %v2335, %v2410
        %v2412 = vpop.f32.mrf.mxu0
        %v2413 = vadd.f32 %v2335, %v2412
        %2414 = vmatmul.bf16.gmra.mxu0 %v2375
        %v2415 = vpop.f32.mrf.mxu0
        %v2416 = vadd.f32 %v2335, %v2415
        %v2417 = vpop.f32.mrf.mxu0
        %v2418 = vadd.f32 %v2335, %v2417
        %2419 = vmatmul.bf16.gmra.mxu0 %v2378
        %v2420 = vpop.f32.mrf.mxu0
        %v2421 = vadd.f32 %v2335, %v2420
        %v2422 = vpop.f32.mrf.mxu0
        %v2423 = vadd.f32 %v2335, %v2422
        %2424 = vmatmul.bf16.gmra.mxu0 %v2381
        %v2425 = vpop.f32.mrf.mxu0
        %v2426 = vadd.f32 %v2335, %v2425
        %v2427 = vpop.f32.mrf.mxu0
        %v2428 = vadd.f32 %v2335, %v2427
        %2429 = vmatmul.bf16.gmra.mxu0 %v2384
        %v2430 = vpop.f32.mrf.mxu0
        %v2431 = vadd.f32 %v2335, %v2430
        %v2432 = vpop.f32.mrf.mxu0
        %v2433 = vadd.f32 %v2335, %v2432
        %2434 = vdwg.mxu0
        %vm2435 = vcmask 23552
        %2436 = vst.msk [vmem:[%s531] sm:$0xff] %vm2435, %v2396
        %2437 = vst.msk [vmem:[%s531 + $0x8] sm:$0xff] %vm2435, %v2398
        %2438 = vst.msk [vmem:[%s531 + $0x10] sm:$0xff] %vm2435, %v2401
        %2439 = vst.msk [vmem:[%s531 + $0x18] sm:$0xff] %vm2435, %v2403
        %2440 = vst.msk [vmem:[%s531 + $0x20] sm:$0xff] %vm2435, %v2406
        %2441 = vst.msk [vmem:[%s531 + $0x28] sm:$0xff] %vm2435, %v2408
        %2442 = vst.msk [vmem:[%s531 + $0x30] sm:$0xff] %vm2435, %v2411
        %2443 = vst.msk [vmem:[%s531 + $0x38] sm:$0xff] %vm2435, %v2413
        %2444 = vst.msk [vmem:[%s531 + $0x40] sm:$0xff] %vm2435, %v2416
        %2445 = vst.msk [vmem:[%s531 + $0x48] sm:$0xff] %vm2435, %v2418
        %2446 = vst.msk [vmem:[%s531 + $0x50] sm:$0xff] %vm2435, %v2421
        %2447 = vst.msk [vmem:[%s531 + $0x58] sm:$0xff] %vm2435, %v2423
        %2448 = vst.msk [vmem:[%s531 + $0x60] sm:$0xff] %vm2435, %v2426
        %2449 = vst.msk [vmem:[%s531 + $0x68] sm:$0xff] %vm2435, %v2428
        %2450 = vst.msk [vmem:[%s531 + $0x70] sm:$0xff] %vm2435, %v2431
        %2451 = vst.msk [vmem:[%s531 + $0x78] sm:$0xff] %vm2435, %v2433
        %2468 = vrot.lane.b32.xlu0 %v1991, 3
        %v2469 = vpop.permute.xlu0 %2468
        %2470 = vrot.lane.b32.xlu0 %v1993, 3
        %v2471 = vpop.permute.xlu0 %2470
        %2472 = vrot.lane.b32.xlu0 %v1996, 3
        %v2473 = vpop.permute.xlu0 %2472
        %2474 = vrot.lane.b32.xlu0 %v1998, 3
        %v2475 = vpop.permute.xlu0 %2474
        %2476 = vrot.lane.b32.xlu0 %v2001, 3
        %v2477 = vpop.permute.xlu0 %2476
        %2478 = vrot.lane.b32.xlu0 %v2003, 3
        %v2479 = vpop.permute.xlu0 %2478
        %2480 = vrot.lane.b32.xlu0 %v2006, 3
        %v2481 = vpop.permute.xlu0 %2480
        %2482 = vrot.lane.b32.xlu0 %v2008, 3
        %v2483 = vpop.permute.xlu0 %2482
        %2484 = vrot.lane.b32.xlu0 %v2011, 3
        %v2485 = vpop.permute.xlu0 %2484
        %2486 = vrot.lane.b32.xlu0 %v2013, 3
        %v2487 = vpop.permute.xlu0 %2486
        %2488 = vrot.lane.b32.xlu0 %v2016, 3
        %v2489 = vpop.permute.xlu0 %2488
        %2490 = vrot.lane.b32.xlu0 %v2018, 3
        %v2491 = vpop.permute.xlu0 %2490
        %2492 = vrot.lane.b32.xlu0 %v2021, 3
        %v2493 = vpop.permute.xlu0 %2492
        %2494 = vrot.lane.b32.xlu0 %v2023, 3
        %v2495 = vpop.permute.xlu0 %2494
        %2496 = vrot.lane.b32.xlu0 %v2026, 3
        %v2497 = vpop.permute.xlu0 %2496
        %2498 = vrot.lane.b32.xlu0 %v2028, 3
        %v2499 = vpop.permute.xlu0 %2498
        %vm2516 = vcmask 31768
        %2517 = vst.msk [vmem:[%s531] sm:$0xff] %vm2516, %v2469
        %2518 = vst.msk [vmem:[%s531 + $0x8] sm:$0xff] %vm2516, %v2471
        %2519 = vst.msk [vmem:[%s531 + $0x10] sm:$0xff] %vm2516, %v2473
        %2520 = vst.msk [vmem:[%s531 + $0x18] sm:$0xff] %vm2516, %v2475
        %2521 = vst.msk [vmem:[%s531 + $0x20] sm:$0xff] %vm2516, %v2477
        %2522 = vst.msk [vmem:[%s531 + $0x28] sm:$0xff] %vm2516, %v2479
        %2523 = vst.msk [vmem:[%s531 + $0x30] sm:$0xff] %vm2516, %v2481
        %2524 = vst.msk [vmem:[%s531 + $0x38] sm:$0xff] %vm2516, %v2483
        %2525 = vst.msk [vmem:[%s531 + $0x40] sm:$0xff] %vm2516, %v2485
        %2526 = vst.msk [vmem:[%s531 + $0x48] sm:$0xff] %vm2516, %v2487
        %2527 = vst.msk [vmem:[%s531 + $0x50] sm:$0xff] %vm2516, %v2489
        %2528 = vst.msk [vmem:[%s531 + $0x58] sm:$0xff] %vm2516, %v2491
        %2529 = vst.msk [vmem:[%s531 + $0x60] sm:$0xff] %vm2516, %v2493
        %2530 = vst.msk [vmem:[%s531 + $0x68] sm:$0xff] %vm2516, %v2495
        %2531 = vst.msk [vmem:[%s531 + $0x70] sm:$0xff] %vm2516, %v2497
        %2532 = vst.msk [vmem:[%s531 + $0x78] sm:$0xff] %vm2516, %v2499
        %s2533 = sand.u32 %s318, 1
        %s2534 = sand.u32 %s318, 1
        %s2535 = smul.addr %s2534, 128
        %s2536 = scalar_lea.vmem [#allocation9], %s2535
        // Predicated region
        $region89: #{tpu_custom_call.1} parent=71 // pred_check
          %p2537 = pneg %p328
        $region90: #{tpu_custom_call.1} parent=71 // pred_check_branch
          %2539 = sbr.rel (%p2537) target = $region92
        $region91: #{tpu_custom_call.1} parent=71 // pred_region
          %s2540 = smul.u32 16, %s27
          %s2541 = ssub.s32 25, %s2540
          %p2542 = scmp.lt.s32.totalorder %s2541, 16
          %s2543 = scalar_select %p2542, %s2541, 16
          %s2544 = smul.u32 8, %s2543
          %p2545 = scmp.ne.s32.totalorder 0, %s2544
          %s2546 = smul.addr %s2540, 8
          %s2547 = scalar_lea.vmem %s13, %s2546
          // Predicated region
          $region93: #{tpu_custom_call.1} parent=91 // pred_check
            %p2548 = pneg %p2545
          $region94: #{tpu_custom_call.1} parent=91 // pred_check_branch
            %2550 = sbr.rel (%p2548) target = $region96
          $region95: #{tpu_custom_call.1} parent=91 // pred_region
            // Predicated region
            $region97: #{tpu_custom_call.1} parent=95 // pred_check
              _
            $region98: #{tpu_custom_call.1} parent=95 // pred_check_branch
              %2552 = sbr.rel (0) target = $region100
            $region99: #{tpu_custom_call.1} parent=95 // pred_region
              // Predicated region
              $region119: #{tpu_custom_call.1} parent=99 // pred_check
                _
              $region120: #{tpu_custom_call.1} parent=99 // pred_check_branch
                %2632 = sbr.rel (0) target = $region122
              $region121: #{tpu_custom_call.1} parent=99 // pred_region
                %s2633 = sshrl.u32 %s2543, 4
                // While loop
                $region123: #{tpu_custom_call.1} parent=121 // loop_pre_header
                  _
                $region124: #{tpu_custom_call.1} parent=121 // loop_header
                  %s2635 = sphi 0, %s2637
                  %p2636 = scmp.ge.s32.totalorder %s2635, %s2633
                  %s2640 = sphi 0, %s2677
                  %s2641 = sphi %s2536, %s2680
                  %s2642 = sphi %s2547, %s2681
                $region125: #{tpu_custom_call.1} parent=121 // loop_header_branch
                  %2639 = sbr.rel (%p2636) target = $region129
                $region126: #{tpu_custom_call.1} parent=121 // loop_body
                  %v2643 = vld [vmem:[%s2641] sm:$0xff]
                  %2644 = vst [vmem:[%s2642] sm:$0xff] %v2643
                  %v2645 = vld [vmem:[%s2641 + $0x8] sm:$0xff]
                  %2646 = vst [vmem:[%s2642 + $0x8] sm:$0xff] %v2645
                  %v2647 = vld [vmem:[%s2641 + $0x10] sm:$0xff]
                  %2648 = vst [vmem:[%s2642 + $0x10] sm:$0xff] %v2647
                  %v2649 = vld [vmem:[%s2641 + $0x18] sm:$0xff]
                  %2650 = vst [vmem:[%s2642 + $0x18] sm:$0xff] %v2649
                  %v2651 = vld [vmem:[%s2641 + $0x20] sm:$0xff]
                  %2652 = vst [vmem:[%s2642 + $0x20] sm:$0xff] %v2651
                  %v2653 = vld [vmem:[%s2641 + $0x28] sm:$0xff]
                  %2654 = vst [vmem:[%s2642 + $0x28] sm:$0xff] %v2653
                  %v2655 = vld [vmem:[%s2641 + $0x30] sm:$0xff]
                  %2656 = vst [vmem:[%s2642 + $0x30] sm:$0xff] %v2655
                  %v2657 = vld [vmem:[%s2641 + $0x38] sm:$0xff]
                  %2658 = vst [vmem:[%s2642 + $0x38] sm:$0xff] %v2657
                  %v2659 = vld [vmem:[%s2641 + $0x40] sm:$0xff]
                  %2660 = vst [vmem:[%s2642 + $0x40] sm:$0xff] %v2659
                  %v2661 = vld [vmem:[%s2641 + $0x48] sm:$0xff]
                  %2662 = vst [vmem:[%s2642 + $0x48] sm:$0xff] %v2661
                  %v2663 = vld [vmem:[%s2641 + $0x50] sm:$0xff]
                  %2664 = vst [vmem:[%s2642 + $0x50] sm:$0xff] %v2663
                  %v2665 = vld [vmem:[%s2641 + $0x58] sm:$0xff]
                  %2666 = vst [vmem:[%s2642 + $0x58] sm:$0xff] %v2665
                  %v2667 = vld [vmem:[%s2641 + $0x60] sm:$0xff]
                  %2668 = vst [vmem:[%s2642 + $0x60] sm:$0xff] %v2667
                  %v2669 = vld [vmem:[%s2641 + $0x68] sm:$0xff]
                  %2670 = vst [vmem:[%s2642 + $0x68] sm:$0xff] %v2669
                  %v2671 = vld [vmem:[%s2641 + $0x70] sm:$0xff]
                  %2672 = vst [vmem:[%s2642 + $0x70] sm:$0xff] %v2671
                  %v2673 = vld [vmem:[%s2641 + $0x78] sm:$0xff]
                  %2674 = vst [vmem:[%s2642 + $0x78] sm:$0xff] %v2673
                  %s2675 = sadd.s32 1, %s2640
                  %p2676 = scmp.ge.s32.totalorder %s2675, %s2633
                  %s2677 = scalar_select %p2676, 0, %s2675
                  %s2678 = smul.u32 %s2677, 128
                  %s2679 = smul.u32 %s2677, 128
                  %s2680 = scalar_lea.vmem %s2536, %s2678 [#allocation9]
                  %s2681 = scalar_lea.vmem %s2547, %s2679
                $region127: #{tpu_custom_call.1} parent=121 // loop_footer
                  %s2637 = sadd.s32 %s2635, 1
                $region128: #{tpu_custom_call.1} parent=121 // loop_footer_branch
                  %2634 = sbr.rel target = $region124
                $region129: #{tpu_custom_call.1} parent=121 // loop_exit
                  _
                %s2682 = sshrl.u32 %s2543, 4
                %s2683 = sand.u32 %s2543, 15
                %s2684 = smul.u32 %s2682, 16
                %s2685 = smul.u32 8, %s2684
                %s2686 = scalar_lea.vmem %s2536, %s2685 [#allocation9]
                %s2687 = smul.u32 8, %s2684
                %s2688 = scalar_lea.vmem %s2547, %s2687
                // While loop
                $region130: #{tpu_custom_call.1} parent=121 // loop_pre_header
                  _
                $region131: #{tpu_custom_call.1} parent=121 // loop_header
                  %s2690 = sphi 0, %s2692
                  %p2691 = scmp.ge.s32.totalorder %s2690, %s2683
                  %s2695 = sphi 0, %s2702
                  %s2696 = sphi %s2686, %s2705
                  %s2697 = sphi %s2688, %s2706
                $region132: #{tpu_custom_call.1} parent=121 // loop_header_branch
                  %2694 = sbr.rel (%p2691) target = $region136
                $region133: #{tpu_custom_call.1} parent=121 // loop_body
                  %v2698 = vld [vmem:[%s2696] sm:$0xff]
                  %2699 = vst [vmem:[%s2697] sm:$0xff] %v2698
                  %s2700 = sadd.s32 1, %s2695
                  %p2701 = scmp.ge.s32.totalorder %s2700, %s2683
                  %s2702 = scalar_select %p2701, 0, %s2700
                  %s2703 = smul.u32 %s2702, 8
                  %s2704 = smul.u32 %s2702, 8
                  %s2705 = scalar_lea.vmem %s2686, %s2703 [#allocation9]
                  %s2706 = scalar_lea.vmem %s2688, %s2704
                $region134: #{tpu_custom_call.1} parent=121 // loop_footer
                  %s2692 = sadd.s32 %s2690, 1
                $region135: #{tpu_custom_call.1} parent=121 // loop_footer_branch
                  %2689 = sbr.rel target = $region131
                $region136: #{tpu_custom_call.1} parent=121 // loop_exit
                  _
              $region122: #{tpu_custom_call.1} parent=99 // pred_fallthru
                _
              // Predicated region
              $region137: #{tpu_custom_call.1} parent=99 // pred_check
                _
              $region138: #{tpu_custom_call.1} parent=99 // pred_check_branch
                %2708 = sbr.rel target = $region140
              $region139: #{tpu_custom_call.1} parent=99 // pred_region
                _
              $region140: #{tpu_custom_call.1} parent=99 // pred_fallthru
                _
            $region100: #{tpu_custom_call.1} parent=95 // pred_fallthru
              _
            // Predicated region
            $region101: #{tpu_custom_call.1} parent=95 // pred_check
              _
            $region102: #{tpu_custom_call.1} parent=95 // pred_check_branch
              %2554 = sbr.rel target = $region104
            $region103: #{tpu_custom_call.1} parent=95 // pred_region
              %s2556 = ssub.s32 256, 1
              %s2557 = sshrl.u32 %s2543, 4
              // While loop
              $region105: #{tpu_custom_call.1} parent=103 // loop_pre_header
                _
              $region106: #{tpu_custom_call.1} parent=103 // loop_header
                %s2559 = sphi 0, %s2561
                %p2560 = scmp.ge.s32.totalorder %s2559, %s2557
                %s2564 = sphi 0, %s2601
                %s2565 = sphi %s2536, %s2604
                %s2566 = sphi %s2547, %s2605
              $region107: #{tpu_custom_call.1} parent=103 // loop_header_branch
                %2563 = sbr.rel (%p2560) target = $region111
              $region108: #{tpu_custom_call.1} parent=103 // loop_body
                %v2567 = vld [vmem:[%s2565] sm:%s2556]
                %2568 = vst [vmem:[%s2566] sm:%s2556] %v2567
                %v2569 = vld [vmem:[%s2565 + $0x8] sm:%s2556]
                %2570 = vst [vmem:[%s2566 + $0x8] sm:%s2556] %v2569
                %v2571 = vld [vmem:[%s2565 + $0x10] sm:%s2556]
                %2572 = vst [vmem:[%s2566 + $0x10] sm:%s2556] %v2571
                %v2573 = vld [vmem:[%s2565 + $0x18] sm:%s2556]
                %2574 = vst [vmem:[%s2566 + $0x18] sm:%s2556] %v2573
                %v2575 = vld [vmem:[%s2565 + $0x20] sm:%s2556]
                %2576 = vst [vmem:[%s2566 + $0x20] sm:%s2556] %v2575
                %v2577 = vld [vmem:[%s2565 + $0x28] sm:%s2556]
                %2578 = vst [vmem:[%s2566 + $0x28] sm:%s2556] %v2577
                %v2579 = vld [vmem:[%s2565 + $0x30] sm:%s2556]
                %2580 = vst [vmem:[%s2566 + $0x30] sm:%s2556] %v2579
                %v2581 = vld [vmem:[%s2565 + $0x38] sm:%s2556]
                %2582 = vst [vmem:[%s2566 + $0x38] sm:%s2556] %v2581
                %v2583 = vld [vmem:[%s2565 + $0x40] sm:%s2556]
                %2584 = vst [vmem:[%s2566 + $0x40] sm:%s2556] %v2583
                %v2585 = vld [vmem:[%s2565 + $0x48] sm:%s2556]
                %2586 = vst [vmem:[%s2566 + $0x48] sm:%s2556] %v2585
                %v2587 = vld [vmem:[%s2565 + $0x50] sm:%s2556]
                %2588 = vst [vmem:[%s2566 + $0x50] sm:%s2556] %v2587
                %v2589 = vld [vmem:[%s2565 + $0x58] sm:%s2556]
                %2590 = vst [vmem:[%s2566 + $0x58] sm:%s2556] %v2589
                %v2591 = vld [vmem:[%s2565 + $0x60] sm:%s2556]
                %2592 = vst [vmem:[%s2566 + $0x60] sm:%s2556] %v2591
                %v2593 = vld [vmem:[%s2565 + $0x68] sm:%s2556]
                %2594 = vst [vmem:[%s2566 + $0x68] sm:%s2556] %v2593
                %v2595 = vld [vmem:[%s2565 + $0x70] sm:%s2556]
                %2596 = vst [vmem:[%s2566 + $0x70] sm:%s2556] %v2595
                %v2597 = vld [vmem:[%s2565 + $0x78] sm:%s2556]
                %2598 = vst [vmem:[%s2566 + $0x78] sm:%s2556] %v2597
                %s2599 = sadd.s32 1, %s2564
                %p2600 = scmp.ge.s32.totalorder %s2599, %s2557
                %s2601 = scalar_select %p2600, 0, %s2599
                %s2602 = smul.u32 %s2601, 128
                %s2603 = smul.u32 %s2601, 128
                %s2604 = scalar_lea.vmem %s2536, %s2602 [#allocation9]
                %s2605 = scalar_lea.vmem %s2547, %s2603
              $region109: #{tpu_custom_call.1} parent=103 // loop_footer
                %s2561 = sadd.s32 %s2559, 1
              $region110: #{tpu_custom_call.1} parent=103 // loop_footer_branch
                %2558 = sbr.rel target = $region106
              $region111: #{tpu_custom_call.1} parent=103 // loop_exit
                _
              %s2606 = sshrl.u32 %s2543, 4
              %s2607 = sand.u32 %s2543, 15
              %s2608 = smul.u32 %s2606, 16
              %s2609 = smul.u32 8, %s2608
              %s2610 = scalar_lea.vmem %s2536, %s2609 [#allocation9]
              %s2611 = smul.u32 8, %s2608
              %s2612 = scalar_lea.vmem %s2547, %s2611
              // While loop
              $region112: #{tpu_custom_call.1} parent=103 // loop_pre_header
                _
              $region113: #{tpu_custom_call.1} parent=103 // loop_header
                %s2614 = sphi 0, %s2616
                %p2615 = scmp.ge.s32.totalorder %s2614, %s2607
                %s2619 = sphi 0, %s2626
                %s2620 = sphi %s2610, %s2629
                %s2621 = sphi %s2612, %s2630
              $region114: #{tpu_custom_call.1} parent=103 // loop_header_branch
                %2618 = sbr.rel (%p2615) target = $region118
              $region115: #{tpu_custom_call.1} parent=103 // loop_body
                %v2622 = vld [vmem:[%s2620] sm:%s2556]
                %2623 = vst [vmem:[%s2621] sm:%s2556] %v2622
                %s2624 = sadd.s32 1, %s2619
                %p2625 = scmp.ge.s32.totalorder %s2624, %s2607
                %s2626 = scalar_select %p2625, 0, %s2624
                %s2627 = smul.u32 %s2626, 8
                %s2628 = smul.u32 %s2626, 8
                %s2629 = scalar_lea.vmem %s2610, %s2627 [#allocation9]
                %s2630 = scalar_lea.vmem %s2612, %s2628
              $region116: #{tpu_custom_call.1} parent=103 // loop_footer
                %s2616 = sadd.s32 %s2614, 1
              $region117: #{tpu_custom_call.1} parent=103 // loop_footer_branch
                %2613 = sbr.rel target = $region113
              $region118: #{tpu_custom_call.1} parent=103 // loop_exit
                _
            $region104: #{tpu_custom_call.1} parent=95 // pred_fallthru
              _
          $region96: #{tpu_custom_call.1} parent=91 // pred_fallthru
            _
          %2709 = vnop
        $region92: #{tpu_custom_call.1} parent=71 // pred_fallthru
          _
      $region72: #{tpu_custom_call.1} parent=5 // pred_fallthru
        _
      %p2710 = scmp.le.s32.totalorder 2, %s22
      // Predicated region
      $region141: #{tpu_custom_call.1} parent=5 // pred_check
        %p2711 = pneg %p2710
      $region142: #{tpu_custom_call.1} parent=5 // pred_check_branch
        %2713 = sbr.rel (%p2711) target = $region144
      $region143: #{tpu_custom_call.1} parent=5 // pred_region
        %s2714 = ssub.s32 %s22, 2
        // Predicated region
        $region145: #{tpu_custom_call.1} parent=143 // pred_check
          %p2715 = pneg %p334
        $region146: #{tpu_custom_call.1} parent=143 // pred_check_branch
          %2717 = sbr.rel (%p2715) target = $region148
        $region147: #{tpu_custom_call.1} parent=143 // pred_region
          %s2718 = sand.u32 %s319, 1
          %s2719 = sand.u32 %s319, 1
          %s2720 = smul.addr %s2719, 128
          %s2721 = scalar_lea.vmem [#allocation9], %s2720
        $region148: #{tpu_custom_call.1} parent=143 // pred_fallthru
          _
      $region144: #{tpu_custom_call.1} parent=5 // pred_fallthru
        _
    $region6: #{tpu_custom_call.1} parent=1 // loop_footer
      %s26 = sadd.s32 1, %s22
    $region7: #{tpu_custom_call.1} parent=1 // loop_footer_branch
      %21 = sbr.rel target = $region3
    $region8: #{tpu_custom_call.1} parent=1 // loop_exit
      _
    %2722 = vsyncpa [#allocation3], 1
    %s2723 = scalar_lea.sflag [#allocation3], 1
    %2724 = vsyncpa %s2723, 1
    %2725 = vsyncpa [#allocation5], 1
    %2726 = vsyncpa [#allocation8], 1

</llo_original>
